<compile_context>
chip_gen: v7x
topology: tpu7x:2x2x1
jax: 0.10.0
libtpu: 0.0.40
codegen_flags: <defaults>
</compile_context>

<pallas_src>
import numpy as np
import jax
import jax.numpy as jnp
from jax import lax
from jax.experimental import pallas as pl
from jax.experimental.pallas import tpu as pltpu


def _superattention_kernel(lens_ref,                        # SMEM 1D [2*B]: nt_0..nt_{B-1}, nr_0..nr_{B-1}
                           tgt_ref, ref_ref, rgb_ref,       # [Bt,C,N], [Bt,C,M], [Bt,C,M]
                           wqT_ref, bq_ref, wkT_ref, bk_ref, wvT_ref, bv_ref,
                           att_out_ref,                     # [Bt, N, M]
                           wgT_out_ref):                    # [Bt, C, N]  (pre-transposed)
    Bt, C, N = tgt_ref.shape
    M = ref_ref.shape[2]
    Btot = lens_ref.shape[0] // 2
    b0 = pl.program_id(0) * Bt
    eps = jnp.float32(1e-5)

    # channel-last copies of the feature blocks (cheap in-VMEM XLU transposes)
    tgt = jnp.transpose(tgt_ref[...].astype(jnp.float32), (0, 2, 1))   # [Bt, N, C]
    ref = jnp.transpose(ref_ref[...].astype(jnp.float32), (0, 2, 1))   # [Bt, M, C]
    rgb = jnp.transpose(rgb_ref[...].astype(jnp.float32), (0, 2, 1))   # [Bt, M, C]

    def center_norm(x):
        # per-superpixel: subtract channel mean, L2-normalize over channels (last axis)
        m = jnp.mean(x, axis=-1, keepdims=True)
        xc = x - m
        nrm = jnp.sqrt(jnp.sum(xc * xc, axis=-1, keepdims=True))
        return xc / (nrm + eps)

    def project(x, wT_ref, b_ref):
        # batched 1x1 Conv1d as one wide matmul: [Bt*L, C] @ [C, C] + (1, C) bias
        L = x.shape[1]
        y = jnp.dot(x.reshape(Bt * L, C), wT_ref[...],
                    preferred_element_type=jnp.float32) + b_ref[...]
        return y.reshape(Bt, L, C)

    q = project(center_norm(tgt), wqT_ref, bq_ref)    # [Bt, N, C] (temperature folded: x100)
    k = project(center_norm(ref), wkT_ref, bk_ref)    # [Bt, M, C]
    v = project(rgb, wvT_ref, bv_ref)                 # [Bt, M, C]

    # similarity contracted over channels; 1/0.01 already folded into the query path
    sim = jnp.einsum('bnc,bmc->bnm', q, k, preferred_element_type=jnp.float32)   # [Bt,N,M]

    # per-batch valid-count masks built from SMEM scalars (padding columns/rows -> 0)
    row_ids = lax.broadcasted_iota(jnp.int32, (N, M), 0)
    col_ids = lax.broadcasted_iota(jnp.int32, (N, M), 1)
    row_mask = jnp.stack(
        [(row_ids < lens_ref[b0 + i]).astype(jnp.float32) for i in range(Bt)], axis=0)
    col_mask = jnp.stack(
        [(col_ids < lens_ref[Btot + b0 + i]).astype(jnp.float32) for i in range(Bt)], axis=0)

    # softmax over the reference axis restricted to the valid columns
    sim_m = sim + (col_mask - 1.0) * jnp.float32(1e30)
    smax = jnp.max(sim_m, axis=-1, keepdims=True)
    e = jnp.exp(sim_m - smax) * col_mask
    denom = jnp.sum(e, axis=-1, keepdims=True)
    soft = e * pl.reciprocal(denom, approx=True)      # divide -> EUP reciprocal + VPU mul
    att = soft * row_mask                             # zero invalid target rows (scatter-into-zeros)

    wg = jnp.einsum('bnm,bmc->bnc', att, v, preferred_element_type=jnp.float32)  # [Bt, N, C]

    att_out_ref[...] = att
    wgT_out_ref[...] = jnp.transpose(wg, (0, 2, 1))   # store pre-transposed [Bt, C, N]


def _pick_batch_block(B):
    """Largest divisor of B keeping >= 2 grid steps (v7x megacore) and <= 8 batches/step."""
    if B <= 1:
        return 1
    cap = min(8, B // 2)
    for bt in range(cap, 0, -1):
        if B % bt == 0:
            return bt
    return 1


def superattention_conv(cat_encoded_target, cat_encoded_ref, label_mask_target,
                        label_mask_ref, input_features_in, max_segments,
                        cat_encoded_rgb_ref, max_segments_ref, params,
                        batch_block=None):
    """Pallas implementation of SuperattentionConv.forward (softmax over reference axis)."""
    del input_features_in  # only used for shape tracking in the original module
    B, C, N = cat_encoded_target.shape
    M = cat_encoded_ref.shape[2]
    assert N == max_segments + 1 and M == max_segments_ref + 1

    Wq, bq, Wk, bk, Wv, bv = params
    # Fold the 1/0.01 temperature into the query projection, pre-transpose weights so the
    # kernel does x[Bt*L,C] @ W^T[C,C], and pass biases as (1, C) rows.
    wqT = (jnp.float32(100.0) * Wq.astype(jnp.float32)).T
    wkT = Wk.astype(jnp.float32).T
    wvT = Wv.astype(jnp.float32).T
    bq2 = (jnp.float32(100.0) * bq.astype(jnp.float32)).reshape(1, C)
    bk2 = bk.astype(jnp.float32).reshape(1, C)
    bv2 = bv.astype(jnp.float32).reshape(1, C)

    # per-batch valid superpixel counts: int(max(label_mask)) + 1, flattened 1D for SMEM
    lens_t = jnp.max(label_mask_target.reshape(B, -1), axis=1).astype(jnp.int32) + 1
    lens_r = jnp.max(label_mask_ref.reshape(B, -1), axis=1).astype(jnp.int32) + 1
    lens = jnp.concatenate([lens_t, lens_r], axis=0)             # (2*B,) int32

    Bt = _pick_batch_block(B) if batch_block is None else batch_block
    assert B % Bt == 0, "batch block must divide the batch size"
    grid = (B // Bt,)

    # TODO(synk): when max_segments/N,M grow large, re-budget Bt against v7x's 64 MiB VMEM
    # (att block is 4*Bt*N*M bytes) and set vmem_limit_bytes explicitly.
    grid_spec = pltpu.PrefetchScalarGridSpec(
        num_scalar_prefetch=1,
        grid=grid,
        in_specs=[
            pl.BlockSpec((Bt, C, N), lambda g, L: (g, 0, 0)),    # cat_encoded_target
            pl.BlockSpec((Bt, C, M), lambda g, L: (g, 0, 0)),    # cat_encoded_ref
            pl.BlockSpec((Bt, C, M), lambda g, L: (g, 0, 0)),    # cat_encoded_rgb_ref
            pl.BlockSpec((C, C), lambda g, L: (0, 0)),           # Wq^T (x100, temperature folded)
            pl.BlockSpec((1, C), lambda g, L: (0, 0)),           # bq   (x100)
            pl.BlockSpec((C, C), lambda g, L: (0, 0)),           # Wk^T
            pl.BlockSpec((1, C), lambda g, L: (0, 0)),           # bk
            pl.BlockSpec((C, C), lambda g, L: (0, 0)),           # Wv^T
            pl.BlockSpec((1, C), lambda g, L: (0, 0)),           # bv
        ],
        out_specs=[
            pl.BlockSpec((Bt, N, M), lambda g, L: (g, 0, 0)),    # attention_batch
            pl.BlockSpec((Bt, C, N), lambda g, L: (g, 0, 0)),    # wg_ref_batch (pre-transposed)
        ],
    )

    att_batch, wg_ref_batch_transp = pl.pallas_call(
        _superattention_kernel,
        out_shape=(jax.ShapeDtypeStruct((B, N, M), jnp.float32),
                   jax.ShapeDtypeStruct((B, C, N), jnp.float32)),
        grid_spec=grid_spec,
        compiler_params=pltpu.CompilerParams(dimension_semantics=("parallel",)),
    )(lens, cat_encoded_target, cat_encoded_ref, cat_encoded_rgb_ref,
      wqT, bq2, wkT, bk2, wvT, bv2)

    batch_alpha = jnp.zeros((B, max_segments + 1, 1), jnp.float32)
    return wg_ref_batch_transp, att_batch, batch_alpha


def make_params(key, C, convolution=True):
    """Deterministic init of the three 1x1 Conv1d layers (weight [C,C], bias [C])."""
    if not convolution:
        eye = jnp.eye(C, dtype=jnp.float32)
        zero = jnp.zeros((C,), jnp.float32)
        return eye, zero, eye, zero, eye, zero
    ks = jax.random.split(key, 6)
    s_w, s_b = 0.05, 0.02
    Wq = s_w * jax.random.normal(ks[0], (C, C), jnp.float32)
    bq = s_b * jax.random.normal(ks[1], (C,), jnp.float32)
    Wk = s_w * jax.random.normal(ks[2], (C, C), jnp.float32)
    bk = s_b * jax.random.normal(ks[3], (C,), jnp.float32)
    Wv = s_w * jax.random.normal(ks[4], (C, C), jnp.float32)
    bv = s_b * jax.random.normal(ks[5], (C,), jnp.float32)
    return Wq, bq, Wk, bk, Wv, bv


def _reference(cat_t, cat_r, rgb_r, lens, params, max_seg, max_seg_ref):
    """Pure numpy reference mirroring the PyTorch loop (float64)."""
    Wq, bq, Wk, bk, Wv, bv = [np.asarray(p, np.float64) for p in params]
    bq, bk, bv = bq.reshape(-1, 1), bk.reshape(-1, 1), bv.reshape(-1, 1)
    cat_t, cat_r, rgb_r = [np.asarray(a, np.float64) for a in (cat_t, cat_r, rgb_r)]
    B, C, _ = cat_t.shape
    att = np.zeros((B, max_seg + 1, max_seg_ref + 1), np.float64)
    wg = np.zeros((B, max_seg + 1, C), np.float64)
    eps = 1e-5
    for b in range(B):
        nt, nr = int(lens[b, 0]), int(lens[b, 1])
        t, r, rv = cat_t[b, :, :nt], cat_r[b, :, :nr], rgb_r[b, :, :nr]
        tc = t - t.mean(0, keepdims=True)
        rc = r - r.mean(0, keepdims=True)
        tn = tc / (np.linalg.norm(tc, axis=0, keepdims=True) + eps)
        rn = rc / (np.linalg.norm(rc, axis=0, keepdims=True) + eps)
        q = Wq @ tn + bq
        k = Wk @ rn + bk
        v = Wv @ rv + bv
        sim = (q.T @ k) / 0.01
        e = np.exp(sim - sim.max(-1, keepdims=True))
        soft = e / e.sum(-1, keepdims=True)
        att[b, :nt, :nr] = soft
        wg[b, :nt, :] = soft @ v.T
    return np.transpose(wg, (0, 2, 1)), att


if __name__ == "__main__":
    B, C, H, W = 2, 8, 16, 16
    max_segments, max_segments_ref = 15, 15
    N, M = max_segments + 1, max_segments_ref + 1

    key = jax.random.PRNGKey(0)
    k1, k2, k3, k4, k5, k6 = jax.random.split(key, 6)

    cat_encoded_target = jax.random.normal(k1, (B, C, N), jnp.float32)
    cat_encoded_ref = jax.random.normal(k2, (B, C, M), jnp.float32)
    cat_encoded_rgb_ref = jax.random.normal(k3, (B, C, M), jnp.float32)
    # label maps: integer superpixel ids; max(...)+1 gives the valid count per batch
    label_mask_target = jax.random.randint(k4, (B, H, W), 0, 12, jnp.int32)
    label_mask_ref = jax.random.randint(k5, (B, H, W), 0, 16, jnp.int32)
    input_features_in = jnp.zeros((B, C, H, W), jnp.float32)  # unused (shape tracking only)

    params = make_params(k6, C, convolution=True)

    wg_t, att, alpha = superattention_conv(
        cat_encoded_target, cat_encoded_ref, label_mask_target, label_mask_ref,
        input_features_in, max_segments, cat_encoded_rgb_ref, max_segments_ref, params)
    jax.block_until_ready((wg_t, att, alpha))

    # verify against a pure numpy reference of the PyTorch loop
    lens_np = np.stack([
        np.asarray(jnp.max(label_mask_target.reshape(B, -1), axis=1)) + 1,
        np.asarray(jnp.max(label_mask_ref.reshape(B, -1), axis=1)) + 1,
    ], axis=1)
    wg_ref, att_ref = _reference(cat_encoded_target, cat_encoded_ref,
                                 cat_encoded_rgb_ref, lens_np, params,
                                 max_segments, max_segments_ref)
    np.testing.assert_allclose(np.asarray(att), att_ref, rtol=5e-2, atol=5e-3)
    np.testing.assert_allclose(np.asarray(wg_t), wg_ref, rtol=5e-2, atol=5e-3)
    assert alpha.shape == (B, max_segments + 1, 1) and float(jnp.abs(alpha).sum()) == 0.0

    print("KERNEL_OK")
</pallas_src>

<mosaic_0001>
module attributes {stable_mosaic.version = 11 : i64} {
  func.func @_superattention_kernel(%arg0: i32, %arg1: memref<4xi32, #tpu.memory_space<smem>>, %arg2: memref<1x8x16xf32, #tpu.memory_space<vmem>>, %arg3: memref<1x8x16xf32, #tpu.memory_space<vmem>>, %arg4: memref<1x8x16xf32, #tpu.memory_space<vmem>>, %arg5: memref<8x8xf32, #tpu.memory_space<vmem>>, %arg6: memref<1x8xf32, #tpu.memory_space<vmem>>, %arg7: memref<8x8xf32, #tpu.memory_space<vmem>>, %arg8: memref<1x8xf32, #tpu.memory_space<vmem>>, %arg9: memref<8x8xf32, #tpu.memory_space<vmem>>, %arg10: memref<1x8xf32, #tpu.memory_space<vmem>>, %arg11: memref<1x16x16xf32, #tpu.memory_space<vmem>>, %arg12: memref<1x8x16xf32, #tpu.memory_space<vmem>>) attributes {dimension_semantics = [#tpu.dimension_semantics<parallel>], iteration_bounds = array<i64: 2>, scalar_prefetch = 1 : i64, scratch_operands = 0 : i64, tpu.core_type = #tpu.core_type<tc>, window_params = [{transform_indices = @transform_0, window_bounds = array<i64: 1, 8, 16>}, {transform_indices = @transform_1, window_bounds = array<i64: 1, 8, 16>}, {transform_indices = @transform_2, window_bounds = array<i64: 1, 8, 16>}, {pipeline_mode = #tpu.pipeline_mode<synchronous>, transform_indices = @transform_3, window_bounds = array<i64: 8, 8>}, {pipeline_mode = #tpu.pipeline_mode<synchronous>, transform_indices = @transform_4, window_bounds = array<i64: 1, 8>}, {pipeline_mode = #tpu.pipeline_mode<synchronous>, transform_indices = @transform_5, window_bounds = array<i64: 8, 8>}, {pipeline_mode = #tpu.pipeline_mode<synchronous>, transform_indices = @transform_6, window_bounds = array<i64: 1, 8>}, {pipeline_mode = #tpu.pipeline_mode<synchronous>, transform_indices = @transform_7, window_bounds = array<i64: 8, 8>}, {pipeline_mode = #tpu.pipeline_mode<synchronous>, transform_indices = @transform_8, window_bounds = array<i64: 1, 8>}, {transform_indices = @transform_9, window_bounds = array<i64: 1, 16, 16>}, {transform_indices = @transform_10, window_bounds = array<i64: 1, 8, 16>}]} {
    %c1_i32 = arith.constant 1 : i32
    %0 = arith.muli %arg0, %c1_i32 : i32
    %c0 = arith.constant 0 : index
    %c0_0 = arith.constant 0 : index
    %c0_1 = arith.constant 0 : index
    %1 = vector.load %arg2[%c0, %c0_0, %c0_1] : memref<1x8x16xf32, #tpu.memory_space<vmem>>, vector<1x8x16xf32>
    %2 = tpu.transpose %1, [0, 2, 1] : vector<1x8x16xf32> -> vector<1x16x8xf32>
    %c0_2 = arith.constant 0 : index
    %c0_3 = arith.constant 0 : index
    %c0_4 = arith.constant 0 : index
    %3 = vector.load %arg3[%c0_2, %c0_3, %c0_4] : memref<1x8x16xf32, #tpu.memory_space<vmem>>, vector<1x8x16xf32>
    %4 = tpu.transpose %3, [0, 2, 1] : vector<1x8x16xf32> -> vector<1x16x8xf32>
    %c0_5 = arith.constant 0 : index
    %c0_6 = arith.constant 0 : index
    %c0_7 = arith.constant 0 : index
    %5 = vector.load %arg4[%c0_5, %c0_6, %c0_7] : memref<1x8x16xf32, #tpu.memory_space<vmem>>, vector<1x8x16xf32>
    %6 = tpu.transpose %5, [0, 2, 1] : vector<1x8x16xf32> -> vector<1x16x8xf32>
    %cst = arith.constant dense<0.000000e+00> : vector<1x16xf32>
    %7 = vector.multi_reduction <add>, %2, %cst [2] : vector<1x16x8xf32> to vector<1x16xf32>
    %8 = vector.shape_cast %7 : vector<1x16xf32> to vector<1x16x1xf32>
    %cst_8 = arith.constant 8.000000e+00 : f32
    %9 = vector.broadcast %cst_8 : f32 to vector<1x16x1xf32>
    %10 = arith.divf %8, %9 : vector<1x16x1xf32>
    %11 = vector.broadcast %10 : vector<1x16x1xf32> to vector<1x16x8xf32>
    %12 = arith.subf %2, %11 : vector<1x16x8xf32>
    %13 = arith.mulf %12, %12 : vector<1x16x8xf32>
    %cst_9 = arith.constant dense<0.000000e+00> : vector<1x16xf32>
    %14 = vector.multi_reduction <add>, %13, %cst_9 [2] : vector<1x16x8xf32> to vector<1x16xf32>
    %15 = vector.shape_cast %14 : vector<1x16xf32> to vector<1x16x1xf32>
    %16 = math.sqrt %15 : vector<1x16x1xf32>
    %cst_10 = arith.constant 9.99999974E-6 : f32
    %17 = vector.broadcast %cst_10 : f32 to vector<1x16x1xf32>
    %18 = arith.addf %16, %17 : vector<1x16x1xf32>
    %19 = vector.broadcast %18 : vector<1x16x1xf32> to vector<1x16x8xf32>
    %20 = arith.divf %12, %19 : vector<1x16x8xf32>
    %21 = vector.shape_cast %20 : vector<1x16x8xf32> to vector<16x8xf32>
    %c0_11 = arith.constant 0 : index
    %c0_12 = arith.constant 0 : index
    %22 = vector.load %arg5[%c0_11, %c0_12] : memref<8x8xf32, #tpu.memory_space<vmem>>, vector<8x8xf32>
    %cst_13 = arith.constant dense<0.000000e+00> : vector<16x8xf32>
    %23 = tpu.matmul %21, %22, %cst_13 {dimension_numbers = #tpu.dot_dimension_numbers<[1], [0], [0], [1], [0, 0, 1, 1], [], []>} : vector<16x8xf32>, vector<8x8xf32>, vector<16x8xf32> -> vector<16x8xf32>
    %c0_14 = arith.constant 0 : index
    %c0_15 = arith.constant 0 : index
    %24 = vector.load %arg6[%c0_14, %c0_15] : memref<1x8xf32, #tpu.memory_space<vmem>>, vector<1x8xf32>
    %25 = vector.broadcast %24 : vector<1x8xf32> to vector<16x8xf32>
    %26 = arith.addf %23, %25 : vector<16x8xf32>
    %27 = vector.shape_cast %26 : vector<16x8xf32> to vector<1x16x8xf32>
    %cst_16 = arith.constant dense<0.000000e+00> : vector<1x16xf32>
    %28 = vector.multi_reduction <add>, %4, %cst_16 [2] : vector<1x16x8xf32> to vector<1x16xf32>
    %29 = vector.shape_cast %28 : vector<1x16xf32> to vector<1x16x1xf32>
    %cst_17 = arith.constant 8.000000e+00 : f32
    %30 = vector.broadcast %cst_17 : f32 to vector<1x16x1xf32>
    %31 = arith.divf %29, %30 : vector<1x16x1xf32>
    %32 = vector.broadcast %31 : vector<1x16x1xf32> to vector<1x16x8xf32>
    %33 = arith.subf %4, %32 : vector<1x16x8xf32>
    %34 = arith.mulf %33, %33 : vector<1x16x8xf32>
    %cst_18 = arith.constant dense<0.000000e+00> : vector<1x16xf32>
    %35 = vector.multi_reduction <add>, %34, %cst_18 [2] : vector<1x16x8xf32> to vector<1x16xf32>
    %36 = vector.shape_cast %35 : vector<1x16xf32> to vector<1x16x1xf32>
    %37 = math.sqrt %36 : vector<1x16x1xf32>
    %cst_19 = arith.constant 9.99999974E-6 : f32
    %38 = vector.broadcast %cst_19 : f32 to vector<1x16x1xf32>
    %39 = arith.addf %37, %38 : vector<1x16x1xf32>
    %40 = vector.broadcast %39 : vector<1x16x1xf32> to vector<1x16x8xf32>
    %41 = arith.divf %33, %40 : vector<1x16x8xf32>
    %42 = vector.shape_cast %41 : vector<1x16x8xf32> to vector<16x8xf32>
    %c0_20 = arith.constant 0 : index
    %c0_21 = arith.constant 0 : index
    %43 = vector.load %arg7[%c0_20, %c0_21] : memref<8x8xf32, #tpu.memory_space<vmem>>, vector<8x8xf32>
    %cst_22 = arith.constant dense<0.000000e+00> : vector<16x8xf32>
    %44 = tpu.matmul %42, %43, %cst_22 {dimension_numbers = #tpu.dot_dimension_numbers<[1], [0], [0], [1], [0, 0, 1, 1], [], []>} : vector<16x8xf32>, vector<8x8xf32>, vector<16x8xf32> -> vector<16x8xf32>
    %c0_23 = arith.constant 0 : index
    %c0_24 = arith.constant 0 : index
    %45 = vector.load %arg8[%c0_23, %c0_24] : memref<1x8xf32, #tpu.memory_space<vmem>>, vector<1x8xf32>
    %46 = vector.broadcast %45 : vector<1x8xf32> to vector<16x8xf32>
    %47 = arith.addf %44, %46 : vector<16x8xf32>
    %48 = vector.shape_cast %47 : vector<16x8xf32> to vector<1x16x8xf32>
    %49 = vector.shape_cast %6 : vector<1x16x8xf32> to vector<16x8xf32>
    %c0_25 = arith.constant 0 : index
    %c0_26 = arith.constant 0 : index
    %50 = vector.load %arg9[%c0_25, %c0_26] : memref<8x8xf32, #tpu.memory_space<vmem>>, vector<8x8xf32>
    %cst_27 = arith.constant dense<0.000000e+00> : vector<16x8xf32>
    %51 = tpu.matmul %49, %50, %cst_27 {dimension_numbers = #tpu.dot_dimension_numbers<[1], [0], [0], [1], [0, 0, 1, 1], [], []>} : vector<16x8xf32>, vector<8x8xf32>, vector<16x8xf32> -> vector<16x8xf32>
    %c0_28 = arith.constant 0 : index
    %c0_29 = arith.constant 0 : index
    %52 = vector.load %arg10[%c0_28, %c0_29] : memref<1x8xf32, #tpu.memory_space<vmem>>, vector<1x8xf32>
    %53 = vector.broadcast %52 : vector<1x8xf32> to vector<16x8xf32>
    %54 = arith.addf %51, %53 : vector<16x8xf32>
    %55 = vector.shape_cast %54 : vector<16x8xf32> to vector<1x16x8xf32>
    "tpu.trace_start"() <{level = 10 : i32, message = "bnc,bmc->bnm"}> : () -> ()
    %cst_30 = arith.constant dense<0.000000e+00> : vector<1x16x16xf32>
    %56 = tpu.matmul %27, %48, %cst_30 {dimension_numbers = #tpu.dot_dimension_numbers<[2], [2], [1], [1], [0, 0, 0, 1, 1, 1], [0], [0]>} : vector<1x16x8xf32>, vector<1x16x8xf32>, vector<1x16x16xf32> -> vector<1x16x16xf32>
    "tpu.trace_stop"() : () -> ()
    %57 = tpu.iota {dimensions = array<i32: 0>} : vector<16x16xi32>
    %58 = tpu.iota {dimensions = array<i32: 1>} : vector<16x16xi32>
    %c0_i32 = arith.constant 0 : i32
    %59 = arith.addi %0, %c0_i32 : i32
    %60 = arith.index_cast %59 : i32 to index
    %61 = memref.load %arg1[%60] : memref<4xi32, #tpu.memory_space<smem>>
    %62 = vector.broadcast %61 : i32 to vector<16x16xi32>
    %63 = arith.cmpi slt, %57, %62 : vector<16x16xi32>
    %64 = arith.extui %63 : vector<16x16xi1> to vector<16x16xi32>
    %65 = arith.sitofp %64 : vector<16x16xi32> to vector<16x16xf32>
    %66 = vector.shape_cast %65 : vector<16x16xf32> to vector<1x16x16xf32>
    %c2_i32 = arith.constant 2 : i32
    %67 = arith.addi %c2_i32, %0 : i32
    %c0_i32_31 = arith.constant 0 : i32
    %68 = arith.addi %67, %c0_i32_31 : i32
    %69 = arith.index_cast %68 : i32 to index
    %70 = memref.load %arg1[%69] : memref<4xi32, #tpu.memory_space<smem>>
    %71 = vector.broadcast %70 : i32 to vector<16x16xi32>
    %72 = arith.cmpi slt, %58, %71 : vector<16x16xi32>
    %73 = arith.extui %72 : vector<16x16xi1> to vector<16x16xi32>
    %74 = arith.sitofp %73 : vector<16x16xi32> to vector<16x16xf32>
    %75 = vector.shape_cast %74 : vector<16x16xf32> to vector<1x16x16xf32>
    %cst_32 = arith.constant 1.000000e+00 : f32
    %76 = vector.broadcast %cst_32 : f32 to vector<1x16x16xf32>
    %77 = arith.subf %75, %76 : vector<1x16x16xf32>
    %cst_33 = arith.constant 1.000000e+30 : f32
    %78 = vector.broadcast %cst_33 : f32 to vector<1x16x16xf32>
    %79 = arith.mulf %77, %78 : vector<1x16x16xf32>
    %80 = arith.addf %56, %79 : vector<1x16x16xf32>
    %cst_34 = arith.constant dense<0xFF800000> : vector<1x16xf32>
    %81 = vector.multi_reduction <maximumf>, %80, %cst_34 [2] : vector<1x16x16xf32> to vector<1x16xf32>
    %82 = vector.shape_cast %81 : vector<1x16xf32> to vector<1x16x1xf32>
    %83 = vector.broadcast %82 : vector<1x16x1xf32> to vector<1x16x16xf32>
    %84 = arith.subf %80, %83 : vector<1x16x16xf32>
    %85 = math.exp %84 : vector<1x16x16xf32>
    %86 = arith.mulf %85, %75 : vector<1x16x16xf32>
    %cst_35 = arith.constant dense<0.000000e+00> : vector<1x16xf32>
    %87 = vector.multi_reduction <add>, %86, %cst_35 [2] : vector<1x16x16xf32> to vector<1x16xf32>
    %88 = vector.shape_cast %87 : vector<1x16xf32> to vector<1x16x1xf32>
    %89 = tpu.reciprocal %88 {approx = true} : vector<1x16x1xf32> -> vector<1x16x1xf32>
    %90 = vector.broadcast %89 : vector<1x16x1xf32> to vector<1x16x16xf32>
    %91 = arith.mulf %86, %90 : vector<1x16x16xf32>
    %92 = arith.mulf %91, %66 : vector<1x16x16xf32>
    "tpu.trace_start"() <{level = 10 : i32, message = "bnm,bmc->bnc"}> : () -> ()
    %cst_36 = arith.constant dense<0.000000e+00> : vector<1x16x8xf32>
    %93 = tpu.matmul %92, %55, %cst_36 {dimension_numbers = #tpu.dot_dimension_numbers<[2], [1], [1], [2], [0, 0, 0, 1, 1, 2], [0], [0]>} : vector<1x16x16xf32>, vector<1x16x8xf32>, vector<1x16x8xf32> -> vector<1x16x8xf32>
    "tpu.trace_stop"() : () -> ()
    %c0_37 = arith.constant 0 : index
    %c0_38 = arith.constant 0 : index
    %c0_39 = arith.constant 0 : index
    %94 = vector.load %arg11[%c0_37, %c0_38, %c0_39] : memref<1x16x16xf32, #tpu.memory_space<vmem>>, vector<1x16x16xf32>
    tpu.vector_store %arg11[%c0_37, %c0_38, %c0_39], %92 {strides = array<i32>} : memref<1x16x16xf32, #tpu.memory_space<vmem>>, vector<1x16x16xf32>,
    %95 = tpu.transpose %93, [0, 2, 1] : vector<1x16x8xf32> -> vector<1x8x16xf32>
    %c0_40 = arith.constant 0 : index
    %c0_41 = arith.constant 0 : index
    %c0_42 = arith.constant 0 : index
    %96 = vector.load %arg12[%c0_40, %c0_41, %c0_42] : memref<1x8x16xf32, #tpu.memory_space<vmem>>, vector<1x8x16xf32>
    tpu.vector_store %arg12[%c0_40, %c0_41, %c0_42], %95 {strides = array<i32>} : memref<1x8x16xf32, #tpu.memory_space<vmem>>, vector<1x8x16xf32>,
    return
  }
  func.func @transform_0(%arg0: i32, %arg1: memref<4xi32, #tpu.memory_space<smem>>) -> (i32, i32, i32) {
    %c0_i32 = arith.constant 0 : i32
    %c0_i32_0 = arith.constant 0 : i32
    %c0_i32_1 = arith.constant 0 : i32
    return %arg0, %c0_i32, %c0_i32_0 : i32, i32, i32
  }
  func.func @transform_1(%arg0: i32, %arg1: memref<4xi32, #tpu.memory_space<smem>>) -> (i32, i32, i32) {
    %c0_i32 = arith.constant 0 : i32
    %c0_i32_0 = arith.constant 0 : i32
    %c0_i32_1 = arith.constant 0 : i32
    return %arg0, %c0_i32, %c0_i32_0 : i32, i32, i32
  }
  func.func @transform_2(%arg0: i32, %arg1: memref<4xi32, #tpu.memory_space<smem>>) -> (i32, i32, i32) {
    %c0_i32 = arith.constant 0 : i32
    %c0_i32_0 = arith.constant 0 : i32
    %c0_i32_1 = arith.constant 0 : i32
    return %arg0, %c0_i32, %c0_i32_0 : i32, i32, i32
  }
  func.func @transform_3(%arg0: i32, %arg1: memref<4xi32, #tpu.memory_space<smem>>) -> (i32, i32) {
    %c0_i32 = arith.constant 0 : i32
    %c0_i32_0 = arith.constant 0 : i32
    %c0_i32_1 = arith.constant 0 : i32
    return %c0_i32, %c0_i32_0 : i32, i32
  }
  func.func @transform_4(%arg0: i32, %arg1: memref<4xi32, #tpu.memory_space<smem>>) -> (i32, i32) {
    %c0_i32 = arith.constant 0 : i32
    %c0_i32_0 = arith.constant 0 : i32
    %c0_i32_1 = arith.constant 0 : i32
    return %c0_i32, %c0_i32_0 : i32, i32
  }
  func.func @transform_5(%arg0: i32, %arg1: memref<4xi32, #tpu.memory_space<smem>>) -> (i32, i32) {
    %c0_i32 = arith.constant 0 : i32
    %c0_i32_0 = arith.constant 0 : i32
    %c0_i32_1 = arith.constant 0 : i32
    return %c0_i32, %c0_i32_0 : i32, i32
  }
  func.func @transform_6(%arg0: i32, %arg1: memref<4xi32, #tpu.memory_space<smem>>) -> (i32, i32) {
    %c0_i32 = arith.constant 0 : i32
    %c0_i32_0 = arith.constant 0 : i32
    %c0_i32_1 = arith.constant 0 : i32
    return %c0_i32, %c0_i32_0 : i32, i32
  }
  func.func @transform_7(%arg0: i32, %arg1: memref<4xi32, #tpu.memory_space<smem>>) -> (i32, i32) {
    %c0_i32 = arith.constant 0 : i32
    %c0_i32_0 = arith.constant 0 : i32
    %c0_i32_1 = arith.constant 0 : i32
    return %c0_i32, %c0_i32_0 : i32, i32
  }
  func.func @transform_8(%arg0: i32, %arg1: memref<4xi32, #tpu.memory_space<smem>>) -> (i32, i32) {
    %c0_i32 = arith.constant 0 : i32
    %c0_i32_0 = arith.constant 0 : i32
    %c0_i32_1 = arith.constant 0 : i32
    return %c0_i32, %c0_i32_0 : i32, i32
  }
  func.func @transform_9(%arg0: i32, %arg1: memref<4xi32, #tpu.memory_space<smem>>) -> (i32, i32, i32) {
    %c0_i32 = arith.constant 0 : i32
    %c0_i32_0 = arith.constant 0 : i32
    %c0_i32_1 = arith.constant 0 : i32
    return %arg0, %c0_i32, %c0_i32_0 : i32, i32, i32
  }
  func.func @transform_10(%arg0: i32, %arg1: memref<4xi32, #tpu.memory_space<smem>>) -> (i32, i32, i32) {
    %c0_i32 = arith.constant 0 : i32
    %c0_i32_0 = arith.constant 0 : i32
    %c0_i32_1 = arith.constant 0 : i32
    return %arg0, %c0_i32, %c0_i32_0 : i32, i32, i32
  }
}

</mosaic_0001>

<llo_original>
// kernel: tpu_custom_call.1
$region0: #{tpu_custom_call.1}
  #allocation0 [shape = 'u32[]', space=smem, size = 0x4, offset = 0x4, fixed_abs, tag = 'smem constant byte address 0x4 - core index']
  #allocation1 [shape = 'u32[144,128]{1,0:T(1,128)}', space=vmem, size = 0x12000, scoped, tag = 'internal scratch']
  #allocation2 [shape = 's32[1]{0}', space=sflag, size = 0x4, scoped, tag = 'scoped memory for tpu_custom_call.1']
  #allocation3 [shape = 'u8[512]{0}', space=smem, size = 0x200, scoped, tag = 'prefetched SMEM operand 0']
  %s0 = inlined_call_operand.hbm [shape: s32[4], index: 0, kind: input, shape index: {}]
  %s1 = inlined_call_operand.hbm [shape: f32[2,8,16], index: 1, kind: input, shape index: {}]
  %s2 = inlined_call_operand.hbm [shape: f32[2,8,16], index: 2, kind: input, shape index: {}]
  %s3 = inlined_call_operand.hbm [shape: f32[2,8,16], index: 3, kind: input, shape index: {}]
  %s4 = inlined_call_operand.vmem [shape: f32[8,8], index: 4, kind: input, shape index: {}]
  %s5 = inlined_call_operand.vmem [shape: f32[1,8], index: 5, kind: input, shape index: {}]
  %s6 = inlined_call_operand.vmem [shape: f32[8,8], index: 6, kind: input, shape index: {}]
  %s7 = inlined_call_operand.vmem [shape: f32[1,8], index: 7, kind: input, shape index: {}]
  %s8 = inlined_call_operand.vmem [shape: f32[8,8], index: 8, kind: input, shape index: {}]
  %s9 = inlined_call_operand.vmem [shape: f32[1,8], index: 9, kind: input, shape index: {}]
  %s10 = inlined_call_operand.hbm [shape: f32[2,16,16], index: 10, kind: output, shape index: {0}]
  %s11 = inlined_call_operand.hbm [shape: f32[2,8,16], index: 11, kind: output, shape index: {1}]
  %12 = xla_tuple %s10, %s11
  %s13 = sld [smem:[#allocation0]]
  $region89: #{tpu_custom_call.1} parent=0
    _
  %s15 = ssub.s32 1, %s13
  %s16 = scalar_select 0, %s15, %s13
  %18 = dma.hbm_to_smem %s0, 16, [#allocation3], [#allocation2]
  %19 = dma.done [#allocation2], 16
  %20 = sfence
  $region1: #{tpu_custom_call.1} parent=0
    #allocation4 [shape = 'u8[8192]{0}', space=vmem, size = 0x2000, scoped, tag = 'input window, operand 1']
    #allocation5 [shape = 's32[2]{0}', space=sflag, size = 0x8, scoped, tag = 'scoped memory for tpu_custom_call.1']
    #allocation6 [shape = 's32[2]{0}', space=sflag, size = 0x8, scoped, tag = 'scoped memory for tpu_custom_call.1']
    #allocation7 [shape = 'u8[8192]{0}', space=vmem, size = 0x2000, scoped, tag = 'input window, operand 2']
    #allocation8 [shape = 's32[2]{0}', space=sflag, size = 0x8, scoped, tag = 'scoped memory for tpu_custom_call.1']
    #allocation9 [shape = 'u8[8192]{0}', space=vmem, size = 0x2000, scoped, tag = 'input window, operand 3']
    #allocation10 [shape = 'u8[16384]{0}', space=vmem, size = 0x4000, scoped, tag = 'output window, operand 0']
    #allocation11 [shape = 'u8[8192]{0}', space=vmem, size = 0x2000, scoped, tag = 'output window, operand 1']
    #allocation12 [shape = 's32[2]{0}', space=sflag, size = 0x8, scoped, tag = 'scoped memory for tpu_custom_call.1']
    %21 = vsyncpa [#allocation5], 0
    %s22 = scalar_lea.sflag [#allocation5], 1
    %23 = vsyncpa %s22, 0
    %24 = vsyncpa [#allocation8], 0
    %s25 = scalar_lea.sflag [#allocation8], 1
    %26 = vsyncpa %s25, 0
    %27 = vsyncpa [#allocation6], 0
    %s28 = scalar_lea.sflag [#allocation6], 1
    %29 = vsyncpa %s28, 0
    %30 = vsyncpa [#allocation12], 0
    %s31 = scalar_lea.sflag [#allocation12], 1
    %32 = vsyncpa %s31, 0
    loop: start=0, step=1, limit=4
    $region2: #{tpu_custom_call.1} parent=1 // loop_pre_header
      _
    $region3: #{tpu_custom_call.1} parent=1 // loop_header
      %s34 = sphi 0, %s38
      %p35 = scmp.ge.s32.totalorder %s34, 4
      %s44 = sphi 0, %s46
      %s47 = sphi 0, %s44
      %s48 = sphi 0, %s47
      %s64 = sphi 0, %s48
      %s70 = sphi 0, %s72
      %s73 = sphi 0, %s70
      %s74 = sphi 0, %s73
      %s90 = sphi 0, %s74
      %s96 = sphi 0, %s98
      %s99 = sphi 0, %s96
      %s100 = sphi 0, %s99
      %s116 = sphi 0, %s100
      %s120 = sphi 0, %s120
      %s122 = sphi 0, %s120
      %s123 = sphi 0, %s122
      %s137 = sphi 0, %s123
      %s141 = sphi 0, %s141
      %s143 = sphi 0, %s141
      %s144 = sphi 0, %s143
      %s158 = sphi 0, %s144
      %s162 = sphi 0, %s162
      %s164 = sphi 0, %s162
      %s165 = sphi 0, %s164
      %s179 = sphi 0, %s165
      %s183 = sphi 0, %s183
      %s185 = sphi 0, %s183
      %s186 = sphi 0, %s185
      %s200 = sphi 0, %s186
      %s204 = sphi 0, %s204
      %s206 = sphi 0, %s204
      %s207 = sphi 0, %s206
      %s221 = sphi 0, %s207
      %s225 = sphi 0, %s225
      %s227 = sphi 0, %s225
      %s228 = sphi 0, %s227
      %s242 = sphi 0, %s228
      %s248 = sphi 0, %s250
      %s251 = sphi 0, %s248
      %s252 = sphi 0, %s251
      %s268 = sphi 0, %s252
      %s274 = sphi 0, %s276
      %s277 = sphi 0, %s274
      %s278 = sphi 0, %s277
      %s294 = sphi 0, %s278
    $region4: #{tpu_custom_call.1} parent=1 // loop_header_branch
      %37 = sbr.rel (%p35) target = $region8
    $region5: #{tpu_custom_call.1} parent=1 // loop_body
      %s39 = ssub.s32 %s34, 1
      %s40 = ssub.s32 %s34, 2
      %s41 = sadd.s32 %s34, 1
      %s42 = ssub.s32 %s34, %s41
      %p43 = scmp.eq.s32.totalorder %s42, 0
      %s45 = sadd.s32 %s44, 1
      %s46 = scalar_select %p43, %s44, %s45
      %p49 = pneg %p43
      %p50 = scmp.eq.s32.totalorder %s34, 1
      %p51 = por %p49, %p50
      %p52 = scmp.ne.s32.totalorder %s44, %s47
      %p53 = scmp.eq.s32.totalorder %s34, 0
      %p54 = por %p52, %p53
      %p55 = scmp.ne.s32.totalorder %s44, %s47
      %p56 = scmp.eq.s32.totalorder %s39, 1
      %p57 = por %p55, %p56
      %p58 = scmp.ne.s32.totalorder %s47, %s48
      %p59 = scmp.eq.s32.totalorder %s39, 0
      %p60 = por %p58, %p59
      %p61 = scmp.ne.s32.totalorder %s47, %s48
      %p62 = scmp.eq.s32.totalorder %s40, 1
      %p63 = por %p61, %p62
      %p65 = scmp.ne.s32.totalorder %s48, %s64
      %p66 = scmp.eq.s32.totalorder %s40, 0
      %p67 = por %p65, %p66
      %s68 = ssub.s32 %s34, %s41
      %p69 = scmp.eq.s32.totalorder %s68, 0
      %s71 = sadd.s32 %s70, 1
      %s72 = scalar_select %p69, %s70, %s71
      %p75 = pneg %p69
      %p76 = scmp.eq.s32.totalorder %s34, 1
      %p77 = por %p75, %p76
      %p78 = scmp.ne.s32.totalorder %s70, %s73
      %p79 = scmp.eq.s32.totalorder %s34, 0
      %p80 = por %p78, %p79
      %p81 = scmp.ne.s32.totalorder %s70, %s73
      %p82 = scmp.eq.s32.totalorder %s39, 1
      %p83 = por %p81, %p82
      %p84 = scmp.ne.s32.totalorder %s73, %s74
      %p85 = scmp.eq.s32.totalorder %s39, 0
      %p86 = por %p84, %p85
      %p87 = scmp.ne.s32.totalorder %s73, %s74
      %p88 = scmp.eq.s32.totalorder %s40, 1
      %p89 = por %p87, %p88
      %p91 = scmp.ne.s32.totalorder %s74, %s90
      %p92 = scmp.eq.s32.totalorder %s40, 0
      %p93 = por %p91, %p92
      %s94 = ssub.s32 %s34, %s41
      %p95 = scmp.eq.s32.totalorder %s94, 0
      %s97 = sadd.s32 %s96, 1
      %s98 = scalar_select %p95, %s96, %s97
      %p101 = pneg %p95
      %p102 = scmp.eq.s32.totalorder %s34, 1
      %p103 = por %p101, %p102
      %p104 = scmp.ne.s32.totalorder %s96, %s99
      %p105 = scmp.eq.s32.totalorder %s34, 0
      %p106 = por %p104, %p105
      %p107 = scmp.ne.s32.totalorder %s96, %s99
      %p108 = scmp.eq.s32.totalorder %s39, 1
      %p109 = por %p107, %p108
      %p110 = scmp.ne.s32.totalorder %s99, %s100
      %p111 = scmp.eq.s32.totalorder %s39, 0
      %p112 = por %p110, %p111
      %p113 = scmp.ne.s32.totalorder %s99, %s100
      %p114 = scmp.eq.s32.totalorder %s40, 1
      %p115 = por %p113, %p114
      %p117 = scmp.ne.s32.totalorder %s100, %s116
      %p118 = scmp.eq.s32.totalorder %s40, 0
      %p119 = por %p117, %p118
      %s121 = sadd.s32 %s120, 1
      %p124 = scmp.eq.s32.totalorder %s34, 1
      %p125 = scmp.ne.s32.totalorder %s120, %s122
      %p126 = scmp.eq.s32.totalorder %s34, 0
      %p127 = por %p125, %p126
      %p128 = scmp.ne.s32.totalorder %s120, %s122
      %p129 = scmp.eq.s32.totalorder %s39, 1
      %p130 = por %p128, %p129
      %p131 = scmp.ne.s32.totalorder %s122, %s123
      %p132 = scmp.eq.s32.totalorder %s39, 0
      %p133 = por %p131, %p132
      %p134 = scmp.ne.s32.totalorder %s122, %s123
      %p135 = scmp.eq.s32.totalorder %s40, 1
      %p136 = por %p134, %p135
      %p138 = scmp.ne.s32.totalorder %s123, %s137
      %p139 = scmp.eq.s32.totalorder %s40, 0
      %p140 = por %p138, %p139
      %s142 = sadd.s32 %s141, 1
      %p145 = scmp.eq.s32.totalorder %s34, 1
      %p146 = scmp.ne.s32.totalorder %s141, %s143
      %p147 = scmp.eq.s32.totalorder %s34, 0
      %p148 = por %p146, %p147
      %p149 = scmp.ne.s32.totalorder %s141, %s143
      %p150 = scmp.eq.s32.totalorder %s39, 1
      %p151 = por %p149, %p150
      %p152 = scmp.ne.s32.totalorder %s143, %s144
      %p153 = scmp.eq.s32.totalorder %s39, 0
      %p154 = por %p152, %p153
      %p155 = scmp.ne.s32.totalorder %s143, %s144
      %p156 = scmp.eq.s32.totalorder %s40, 1
      %p157 = por %p155, %p156
      %p159 = scmp.ne.s32.totalorder %s144, %s158
      %p160 = scmp.eq.s32.totalorder %s40, 0
      %p161 = por %p159, %p160
      %s163 = sadd.s32 %s162, 1
      %p166 = scmp.eq.s32.totalorder %s34, 1
      %p167 = scmp.ne.s32.totalorder %s162, %s164
      %p168 = scmp.eq.s32.totalorder %s34, 0
      %p169 = por %p167, %p168
      %p170 = scmp.ne.s32.totalorder %s162, %s164
      %p171 = scmp.eq.s32.totalorder %s39, 1
      %p172 = por %p170, %p171
      %p173 = scmp.ne.s32.totalorder %s164, %s165
      %p174 = scmp.eq.s32.totalorder %s39, 0
      %p175 = por %p173, %p174
      %p176 = scmp.ne.s32.totalorder %s164, %s165
      %p177 = scmp.eq.s32.totalorder %s40, 1
      %p178 = por %p176, %p177
      %p180 = scmp.ne.s32.totalorder %s165, %s179
      %p181 = scmp.eq.s32.totalorder %s40, 0
      %p182 = por %p180, %p181
      %s184 = sadd.s32 %s183, 1
      %p187 = scmp.eq.s32.totalorder %s34, 1
      %p188 = scmp.ne.s32.totalorder %s183, %s185
      %p189 = scmp.eq.s32.totalorder %s34, 0
      %p190 = por %p188, %p189
      %p191 = scmp.ne.s32.totalorder %s183, %s185
      %p192 = scmp.eq.s32.totalorder %s39, 1
      %p193 = por %p191, %p192
      %p194 = scmp.ne.s32.totalorder %s185, %s186
      %p195 = scmp.eq.s32.totalorder %s39, 0
      %p196 = por %p194, %p195
      %p197 = scmp.ne.s32.totalorder %s185, %s186
      %p198 = scmp.eq.s32.totalorder %s40, 1
      %p199 = por %p197, %p198
      %p201 = scmp.ne.s32.totalorder %s186, %s200
      %p202 = scmp.eq.s32.totalorder %s40, 0
      %p203 = por %p201, %p202
      %s205 = sadd.s32 %s204, 1
      %p208 = scmp.eq.s32.totalorder %s34, 1
      %p209 = scmp.ne.s32.totalorder %s204, %s206
      %p210 = scmp.eq.s32.totalorder %s34, 0
      %p211 = por %p209, %p210
      %p212 = scmp.ne.s32.totalorder %s204, %s206
      %p213 = scmp.eq.s32.totalorder %s39, 1
      %p214 = por %p212, %p213
      %p215 = scmp.ne.s32.totalorder %s206, %s207
      %p216 = scmp.eq.s32.totalorder %s39, 0
      %p217 = por %p215, %p216
      %p218 = scmp.ne.s32.totalorder %s206, %s207
      %p219 = scmp.eq.s32.totalorder %s40, 1
      %p220 = por %p218, %p219
      %p222 = scmp.ne.s32.totalorder %s207, %s221
      %p223 = scmp.eq.s32.totalorder %s40, 0
      %p224 = por %p222, %p223
      %s226 = sadd.s32 %s225, 1
      %p229 = scmp.eq.s32.totalorder %s34, 1
      %p230 = scmp.ne.s32.totalorder %s225, %s227
      %p231 = scmp.eq.s32.totalorder %s34, 0
      %p232 = por %p230, %p231
      %p233 = scmp.ne.s32.totalorder %s225, %s227
      %p234 = scmp.eq.s32.totalorder %s39, 1
      %p235 = por %p233, %p234
      %p236 = scmp.ne.s32.totalorder %s227, %s228
      %p237 = scmp.eq.s32.totalorder %s39, 0
      %p238 = por %p236, %p237
      %p239 = scmp.ne.s32.totalorder %s227, %s228
      %p240 = scmp.eq.s32.totalorder %s40, 1
      %p241 = por %p239, %p240
      %p243 = scmp.ne.s32.totalorder %s228, %s242
      %p244 = scmp.eq.s32.totalorder %s40, 0
      %p245 = por %p243, %p244
      %s246 = ssub.s32 %s34, %s41
      %p247 = scmp.eq.s32.totalorder %s246, 0
      %s249 = sadd.s32 %s248, 1
      %s250 = scalar_select %p247, %s248, %s249
      %p253 = pneg %p247
      %p254 = scmp.eq.s32.totalorder %s34, 1
      %p255 = por %p253, %p254
      %p256 = scmp.ne.s32.totalorder %s248, %s251
      %p257 = scmp.eq.s32.totalorder %s34, 0
      %p258 = por %p256, %p257
      %p259 = scmp.ne.s32.totalorder %s248, %s251
      %p260 = scmp.eq.s32.totalorder %s39, 1
      %p261 = por %p259, %p260
      %p262 = scmp.ne.s32.totalorder %s251, %s252
      %p263 = scmp.eq.s32.totalorder %s39, 0
      %p264 = por %p262, %p263
      %p265 = scmp.ne.s32.totalorder %s251, %s252
      %p266 = scmp.eq.s32.totalorder %s40, 1
      %p267 = por %p265, %p266
      %p269 = scmp.ne.s32.totalorder %s252, %s268
      %p270 = scmp.eq.s32.totalorder %s40, 0
      %p271 = por %p269, %p270
      %s272 = ssub.s32 %s34, %s41
      %p273 = scmp.eq.s32.totalorder %s272, 0
      %s275 = sadd.s32 %s274, 1
      %s276 = scalar_select %p273, %s274, %s275
      %p279 = pneg %p273
      %p280 = scmp.eq.s32.totalorder %s34, 1
      %p281 = por %p279, %p280
      %p282 = scmp.ne.s32.totalorder %s274, %s277
      %p283 = scmp.eq.s32.totalorder %s34, 0
      %p284 = por %p282, %p283
      %p285 = scmp.ne.s32.totalorder %s274, %s277
      %p286 = scmp.eq.s32.totalorder %s39, 1
      %p287 = por %p285, %p286
      %p288 = scmp.ne.s32.totalorder %s277, %s278
      %p289 = scmp.eq.s32.totalorder %s39, 0
      %p290 = por %p288, %p289
      %p291 = scmp.ne.s32.totalorder %s277, %s278
      %p292 = scmp.eq.s32.totalorder %s40, 1
      %p293 = por %p291, %p292
      %p295 = scmp.ne.s32.totalorder %s278, %s294
      %p296 = scmp.eq.s32.totalorder %s40, 0
      %p297 = por %p295, %p296
      %p298 = scmp.le.s32.totalorder 1, %s34
      %p299 = scmp.lt.s32.totalorder %s34, 3
      %p300 = pnand %p298, %p299
      %p301 = pneg %p300
      // Predicated region
      $region9: #{tpu_custom_call.1} parent=5 // pred_check
        _
      $region10: #{tpu_custom_call.1} parent=5 // pred_check_branch
        %303 = sbr.rel (%p300) target = $region12
      $region11: #{tpu_custom_call.1} parent=5 // pred_region
        %s304 = ssub.s32 %s34, 1
        // Predicated region
        $region13: #{tpu_custom_call.1} parent=11 // pred_check
          %p305 = pneg %p133
        $region14: #{tpu_custom_call.1} parent=11 // pred_check_branch
          %307 = sbr.rel (%p305) target = $region16
        $region15: #{tpu_custom_call.1} parent=11 // pred_region
          _
        $region16: #{tpu_custom_call.1} parent=11 // pred_fallthru
          _
        // Predicated region
        $region17: #{tpu_custom_call.1} parent=11 // pred_check
          %p308 = pneg %p154
        $region18: #{tpu_custom_call.1} parent=11 // pred_check_branch
          %310 = sbr.rel (%p308) target = $region20
        $region19: #{tpu_custom_call.1} parent=11 // pred_region
          _
        $region20: #{tpu_custom_call.1} parent=11 // pred_fallthru
          _
        // Predicated region
        $region21: #{tpu_custom_call.1} parent=11 // pred_check
          %p311 = pneg %p175
        $region22: #{tpu_custom_call.1} parent=11 // pred_check_branch
          %313 = sbr.rel (%p311) target = $region24
        $region23: #{tpu_custom_call.1} parent=11 // pred_region
          _
        $region24: #{tpu_custom_call.1} parent=11 // pred_fallthru
          _
        // Predicated region
        $region25: #{tpu_custom_call.1} parent=11 // pred_check
          %p314 = pneg %p196
        $region26: #{tpu_custom_call.1} parent=11 // pred_check_branch
          %316 = sbr.rel (%p314) target = $region28
        $region27: #{tpu_custom_call.1} parent=11 // pred_region
          _
        $region28: #{tpu_custom_call.1} parent=11 // pred_fallthru
          _
        // Predicated region
        $region29: #{tpu_custom_call.1} parent=11 // pred_check
          %p317 = pneg %p217
        $region30: #{tpu_custom_call.1} parent=11 // pred_check_branch
          %319 = sbr.rel (%p317) target = $region32
        $region31: #{tpu_custom_call.1} parent=11 // pred_region
          _
        $region32: #{tpu_custom_call.1} parent=11 // pred_fallthru
          _
        // Predicated region
        $region33: #{tpu_custom_call.1} parent=11 // pred_check
          %p320 = pneg %p238
        $region34: #{tpu_custom_call.1} parent=11 // pred_check_branch
          %322 = sbr.rel (%p320) target = $region36
        $region35: #{tpu_custom_call.1} parent=11 // pred_region
          _
        $region36: #{tpu_custom_call.1} parent=11 // pred_fallthru
          _
      $region12: #{tpu_custom_call.1} parent=5 // pred_fallthru
        _
      %p323 = scmp.lt.s32.totalorder %s34, 2
      // Predicated region
      $region37: #{tpu_custom_call.1} parent=5 // pred_check
        %p324 = pneg %p323
      $region38: #{tpu_custom_call.1} parent=5 // pred_check_branch
        %326 = sbr.rel (%p324) target = $region40
      $region39: #{tpu_custom_call.1} parent=5 // pred_region
        // Predicated region
        $region41: #{tpu_custom_call.1} parent=39 // pred_check
          %p327 = pneg %p54
        $region42: #{tpu_custom_call.1} parent=39 // pred_check_branch
          %329 = sbr.rel (%p327) target = $region44
        $region43: #{tpu_custom_call.1} parent=39 // pred_region
          %s330 = sand.u32 %s44, 1
          %s331 = scalar_lea.sflag [#allocation5], %s330
          %s332 = sand.u32 %s44, 1
          %s333 = smul.addr %s332, 8
          %s334 = scalar_lea.vmem [#allocation4], %s333
          %s336 = ssub.s32 128, 128
          %337 = vsyncadd %s331, %s336
          %s338 = smul.addr %s34, 128
          %s339 = scalar_lea.hbm %s1, %s338
          %s341 = sshll.u32 %s334, 4
          %s342 = int_to_ptr.vmem [resolvable:$true] %s341
          %344 = dma.hbm_to_vmem [thread:$0]  %s339, 128, %s342, %s331
        $region44: #{tpu_custom_call.1} parent=39 // pred_fallthru
          _
        // Predicated region
        $region45: #{tpu_custom_call.1} parent=39 // pred_check
          %p345 = pneg %p80
        $region46: #{tpu_custom_call.1} parent=39 // pred_check_branch
          %347 = sbr.rel (%p345) target = $region48
        $region47: #{tpu_custom_call.1} parent=39 // pred_region
          %s348 = sand.u32 %s34, 1
          %s349 = scalar_lea.sflag [#allocation8], %s348
          %s350 = sand.u32 %s70, 1
          %s351 = smul.addr %s350, 8
          %s352 = scalar_lea.vmem [#allocation7], %s351
          %s354 = ssub.s32 128, 128
          %355 = vsyncadd %s349, %s354
          %s356 = smul.addr %s34, 128
          %s357 = scalar_lea.hbm %s2, %s356
          %s359 = sshll.u32 %s352, 4
          %s360 = int_to_ptr.vmem [resolvable:$true] %s359
          %362 = dma.hbm_to_vmem [thread:$0]  %s357, 128, %s360, %s349
        $region48: #{tpu_custom_call.1} parent=39 // pred_fallthru
          _
        // Predicated region
        $region49: #{tpu_custom_call.1} parent=39 // pred_check
          %p363 = pneg %p106
        $region50: #{tpu_custom_call.1} parent=39 // pred_check_branch
          %365 = sbr.rel (%p363) target = $region52
        $region51: #{tpu_custom_call.1} parent=39 // pred_region
          %s366 = sand.u32 %s34, 1
          %s367 = scalar_lea.sflag [#allocation8], %s366
          %s368 = sand.u32 %s96, 1
          %s369 = smul.addr %s368, 8
          %s370 = scalar_lea.vmem [#allocation9], %s369
          %s372 = ssub.s32 128, 128
          %373 = vsyncadd %s367, %s372
          %s374 = smul.addr %s34, 128
          %s375 = scalar_lea.hbm %s3, %s374
          %s377 = sshll.u32 %s370, 4
          %s378 = int_to_ptr.vmem [resolvable:$true] %s377
          %380 = dma.hbm_to_vmem [thread:$0]  %s375, 128, %s378, %s367
        $region52: #{tpu_custom_call.1} parent=39 // pred_fallthru
          _
      $region40: #{tpu_custom_call.1} parent=5 // pred_fallthru
        _
      %p381 = scmp.le.s32.totalorder 1, %s34
      %p382 = scmp.lt.s32.totalorder %s34, 3
      %p383 = pnand %p381, %p382
      %p384 = pneg %p383
      // Predicated region
      $region53: #{tpu_custom_call.1} parent=5 // pred_check
        _
      $region54: #{tpu_custom_call.1} parent=5 // pred_check_branch
        %386 = sbr.rel (%p383) target = $region56
      $region55: #{tpu_custom_call.1} parent=5 // pred_region
        %s387 = ssub.s32 %s34, 1
        %s388 = sand.u32 %s47, 1
        %s389 = scalar_lea.sflag [#allocation5], %s388
        %s390 = sand.u32 %s47, 1
        %s391 = smul.addr %s390, 8
        %s392 = scalar_lea.vmem [#allocation4], %s391
        // Predicated region
        $region57: #{tpu_custom_call.1} parent=55 // pred_check
          %p393 = pneg %p60
        $region58: #{tpu_custom_call.1} parent=55 // pred_check_branch
          %395 = sbr.rel (%p393) target = $region60
        $region59: #{tpu_custom_call.1} parent=55 // pred_region
          %396 = dma.done %s389, 128
        $region60: #{tpu_custom_call.1} parent=55 // pred_fallthru
          _
        %s397 = sand.u32 %s39, 1
        %s398 = scalar_lea.sflag [#allocation8], %s397
        %s399 = sand.u32 %s73, 1
        %s400 = smul.addr %s399, 8
        %s401 = scalar_lea.vmem [#allocation7], %s400
        // Predicated region
        $region61: #{tpu_custom_call.1} parent=55 // pred_check
          %p402 = pneg %p86
        $region62: #{tpu_custom_call.1} parent=55 // pred_check_branch
          %404 = sbr.rel (%p402) target = $region64
        $region63: #{tpu_custom_call.1} parent=55 // pred_region
          %405 = dma.done %s398, 128
        $region64: #{tpu_custom_call.1} parent=55 // pred_fallthru
          _
        %s406 = sand.u32 %s39, 1
        %s407 = scalar_lea.sflag [#allocation8], %s406
        %s408 = sand.u32 %s99, 1
        %s409 = smul.addr %s408, 8
        %s410 = scalar_lea.vmem [#allocation9], %s409
        // Predicated region
        $region65: #{tpu_custom_call.1} parent=55 // pred_check
          %p411 = pneg %p112
        $region66: #{tpu_custom_call.1} parent=55 // pred_check_branch
          %413 = sbr.rel (%p411) target = $region68
        $region67: #{tpu_custom_call.1} parent=55 // pred_region
          %414 = dma.done %s407, 128
        $region68: #{tpu_custom_call.1} parent=55 // pred_fallthru
          _
        %s415 = sand.u32 %s47, 1
        %s416 = scalar_lea.sflag [#allocation5], %s415
        %s417 = sand.u32 %s47, 1
        %s418 = smul.addr %s417, 8
        %s419 = scalar_lea.vmem [#allocation4], %s418
        %p420 = pneg %p60
        %p421 = pneg %p57
        %s422 = sand.u32 %s39, 1
        %s423 = scalar_lea.sflag [#allocation8], %s422
        %s424 = sand.u32 %s73, 1
        %s425 = smul.addr %s424, 8
        %s426 = scalar_lea.vmem [#allocation7], %s425
        %p427 = pneg %p86
        %p428 = pneg %p83
        %s429 = sand.u32 %s39, 1
        %s430 = scalar_lea.sflag [#allocation8], %s429
        %s431 = sand.u32 %s99, 1
        %s432 = smul.addr %s431, 8
        %s433 = scalar_lea.vmem [#allocation9], %s432
        %p434 = pneg %p112
        %p435 = pneg %p109
        %p436 = pneg %p133
        %p437 = pneg %p130
        %p438 = pneg %p154
        %p439 = pneg %p151
        %p440 = pneg %p175
        %p441 = pneg %p172
        %p442 = pneg %p196
        %p443 = pneg %p193
        %p444 = pneg %p217
        %p445 = pneg %p214
        %p446 = pneg %p238
        %p447 = pneg %p235
        %p448 = pneg %p264
        %p449 = pneg %p261
        %s450 = sand.u32 %s251, 1
        %s451 = scalar_lea.sflag [#allocation6], %s450
        %s452 = sand.u32 %s251, 1
        %s453 = smul.addr %s452, 16
        %s454 = scalar_lea.vmem [#allocation10], %s453
        %p455 = pneg %p290
        %p456 = pneg %p287
        %s457 = sand.u32 %s277, 1
        %s458 = scalar_lea.sflag [#allocation12], %s457
        %s459 = sand.u32 %s277, 1
        %s460 = smul.addr %s459, 8
        %s461 = scalar_lea.vmem [#allocation11], %s460
        %v462 = vld [vmem:[%s392] sm:$0xff]
        %463 = vxpose.xlu0.b32.start [1/16] %v462, 128
        %464 = vxpose.xlu0.b32.cont [2/16] 0.0, 128
        %465 = vxpose.xlu0.b32.cont [3/16] 0.0, 128
        %466 = vxpose.xlu0.b32.cont [4/16] 0.0, 128
        %467 = vxpose.xlu0.b32.cont [5/16] 0.0, 128
        %468 = vxpose.xlu0.b32.cont [6/16] 0.0, 128
        %469 = vxpose.xlu0.b32.cont [7/16] 0.0, 128
        %470 = vxpose.xlu0.b32.cont [8/16] 0.0, 128
        %471 = vxpose.xlu0.b32.cont [9/16] 0.0, 128
        %472 = vxpose.xlu0.b32.cont [10/16] 0.0, 128
        %473 = vxpose.xlu0.b32.cont [11/16] 0.0, 128
        %474 = vxpose.xlu0.b32.cont [12/16] 0.0, 128
        %475 = vxpose.xlu0.b32.cont [13/16] 0.0, 128
        %476 = vxpose.xlu0.b32.cont [14/16] 0.0, 128
        %477 = vxpose.xlu0.b32.cont [15/16] 0.0, 128
        %478 = vxpose.xlu0.b32.end [16/16] 0.0, 128
        %v479 = vpop.trf.xlu0
        %v480 = vpop.trf.xlu0
        %v481 = vpop.trf.xlu0
        %v482 = vpop.trf.xlu0
        %v483 = vpop.trf.xlu0
        %v484 = vpop.trf.xlu0
        %v485 = vpop.trf.xlu0
        %v486 = vpop.trf.xlu0
        %v487 = vpop.trf.xlu0
        %v488 = vpop.trf.xlu0
        %v489 = vpop.trf.xlu0
        %v490 = vpop.trf.xlu0
        %v491 = vpop.trf.xlu0
        %v492 = vpop.trf.xlu0
        %v493 = vpop.trf.xlu0
        %v494 = vpop.trf.xlu0
        %v495 = vld [vmem:[%s401] sm:$0xff]
        %496 = vxpose.xlu0.b32.start [1/16] %v495, 128
        %497 = vxpose.xlu0.b32.cont [2/16] 0.0, 128
        %498 = vxpose.xlu0.b32.cont [3/16] 0.0, 128
        %499 = vxpose.xlu0.b32.cont [4/16] 0.0, 128
        %500 = vxpose.xlu0.b32.cont [5/16] 0.0, 128
        %501 = vxpose.xlu0.b32.cont [6/16] 0.0, 128
        %502 = vxpose.xlu0.b32.cont [7/16] 0.0, 128
        %503 = vxpose.xlu0.b32.cont [8/16] 0.0, 128
        %504 = vxpose.xlu0.b32.cont [9/16] 0.0, 128
        %505 = vxpose.xlu0.b32.cont [10/16] 0.0, 128
        %506 = vxpose.xlu0.b32.cont [11/16] 0.0, 128
        %507 = vxpose.xlu0.b32.cont [12/16] 0.0, 128
        %508 = vxpose.xlu0.b32.cont [13/16] 0.0, 128
        %509 = vxpose.xlu0.b32.cont [14/16] 0.0, 128
        %510 = vxpose.xlu0.b32.cont [15/16] 0.0, 128
        %511 = vxpose.xlu0.b32.end [16/16] 0.0, 128
        %v512 = vpop.trf.xlu0
        %v513 = vpop.trf.xlu0
        %v514 = vpop.trf.xlu0
        %v515 = vpop.trf.xlu0
        %v516 = vpop.trf.xlu0
        %v517 = vpop.trf.xlu0
        %v518 = vpop.trf.xlu0
        %v519 = vpop.trf.xlu0
        %v520 = vpop.trf.xlu0
        %v521 = vpop.trf.xlu0
        %v522 = vpop.trf.xlu0
        %v523 = vpop.trf.xlu0
        %v524 = vpop.trf.xlu0
        %v525 = vpop.trf.xlu0
        %v526 = vpop.trf.xlu0
        %v527 = vpop.trf.xlu0
        %v528 = vld [vmem:[%s410] sm:$0xff]
        %529 = vxpose.xlu0.b32.start [1/16] %v528, 128
        %530 = vxpose.xlu0.b32.cont [2/16] 0.0, 128
        %531 = vxpose.xlu0.b32.cont [3/16] 0.0, 128
        %532 = vxpose.xlu0.b32.cont [4/16] 0.0, 128
        %533 = vxpose.xlu0.b32.cont [5/16] 0.0, 128
        %534 = vxpose.xlu0.b32.cont [6/16] 0.0, 128
        %535 = vxpose.xlu0.b32.cont [7/16] 0.0, 128
        %536 = vxpose.xlu0.b32.cont [8/16] 0.0, 128
        %537 = vxpose.xlu0.b32.cont [9/16] 0.0, 128
        %538 = vxpose.xlu0.b32.cont [10/16] 0.0, 128
        %539 = vxpose.xlu0.b32.cont [11/16] 0.0, 128
        %540 = vxpose.xlu0.b32.cont [12/16] 0.0, 128
        %541 = vxpose.xlu0.b32.cont [13/16] 0.0, 128
        %542 = vxpose.xlu0.b32.cont [14/16] 0.0, 128
        %543 = vxpose.xlu0.b32.cont [15/16] 0.0, 128
        %544 = vxpose.xlu0.b32.end [16/16] 0.0, 128
        %v545 = vpop.trf.xlu0
        %v546 = vpop.trf.xlu0
        %v547 = vpop.trf.xlu0
        %v548 = vpop.trf.xlu0
        %v549 = vpop.trf.xlu0
        %v550 = vpop.trf.xlu0
        %v551 = vpop.trf.xlu0
        %v552 = vpop.trf.xlu0
        %v553 = vpop.trf.xlu0
        %v554 = vpop.trf.xlu0
        %v555 = vpop.trf.xlu0
        %v556 = vpop.trf.xlu0
        %v557 = vpop.trf.xlu0
        %v558 = vpop.trf.xlu0
        %v559 = vpop.trf.xlu0
        %v560 = vpop.trf.xlu0
        %vm561 = vcmask 64512
        %v562 = vsel %vm561, %v479, 0.0
        %563 = vadd.xlane.f32.xlu0 %v562
        %v564 = vpop.xlane.xlu0 %563
        %v565 = vsel %vm561, %v480, 0.0
        %566 = vadd.xlane.f32.xlu0 %v565
        %v567 = vpop.xlane.xlu0 %566
        %v568 = vrcp.pop 8.0
        %v569 = vmul.f32 %v564, %v568
        %v570 = vmul.f32 %v567, %v568
        %v571 = vsub.f32 %v479, %v569
        %v572 = vsub.f32 %v480, %v570
        %v573 = vmul.f32 %v571, %v571
        %v574 = vmul.f32 %v572, %v572
        %v575 = vsel %vm561, %v573, 0.0
        %576 = vadd.xlane.f32.xlu0 %v575
        %v577 = vpop.xlane.xlu0 %576
        %v578 = vsel %vm561, %v574, 0.0
        %579 = vadd.xlane.f32.xlu0 %v578
        %v580 = vpop.xlane.xlu0 %579
        %v581 = vrsqrt.pop %v577
        %v582 = vmul.f32 %v577, %v581
        %vm583 = vcmp.eq.f32.partialorder %v577, inf
        %v584 = vsel %vm583, %v577, %v582
        %vm585 = vcmp.eq.f32.partialorder %v577, 0.0
        %v586 = vand.u32 %v577, 2147483648
        %v587 = vsel %vm585, %v586, %v584
        %v588 = vrsqrt.pop %v580
        %v589 = vmul.f32 %v580, %v588
        %vm590 = vcmp.eq.f32.partialorder %v580, inf
        %v591 = vsel %vm590, %v580, %v589
        %vm592 = vcmp.eq.f32.partialorder %v580, 0.0
        %v593 = vand.u32 %v580, 2147483648
        %v594 = vsel %vm592, %v593, %v591
        %v595 = vadd.f32 %v587, 1e-05
        %v596 = vadd.f32 %v594, 1e-05
        %v597 = vrcp.pop %v595
        %v598 = vmul.f32 %v571, %v597
        %v599 = vrcp.pop %v596
        %v600 = vmul.f32 %v572, %v599
        %v601 = vld [vmem:[%s4] sm:$0xff]
        %v602 = vld [vmem:[%s5] sm:$0x1]
        %v604 = vlaneseq
        %v605 = vshrl.u32 %v604, 7
        %v606 = vsub.s32 0, %v605
        %v607 = vrot.slane %v602, %v606
        %v610 = vsel %vm561, %v598, 0
        %v613 = vsel %vm561, %v600, 0
        %615 = vmatprep.subr.mxu0 0.0
        %616 = vmatpush1.msra.mxu0 %v601
        %617 = vmatprep.subr.mxu0 0.0
        %618 = vmatpush1.msra.mxu0 0.0
        %619 = vmatprep.subr.mxu0 0.0
        %620 = vmatpush1.msra.mxu0 0.0
        %621 = vmatprep.subr.mxu0 0.0
        %622 = vmatpush1.msra.mxu0 0.0
        %623 = vmatprep.subr.mxu0 0.0
        %624 = vmatpush1.msra.mxu0 0.0
        %625 = vmatprep.subr.mxu0 0.0
        %626 = vmatpush1.msra.mxu0 0.0
        %627 = vmatprep.subr.mxu0 0.0
        %628 = vmatpush1.msra.mxu0 0.0
        %629 = vmatprep.subr.mxu0 0.0
        %630 = vmatpush1.msra.mxu0 0.0
        %631 = vmatprep.subr.mxu0 0.0
        %632 = vmatpush1.msra.mxu0 0.0
        %633 = vmatprep.subr.mxu0 0.0
        %634 = vmatpush1.msra.mxu0 0.0
        %635 = vmatprep.subr.mxu0 0.0
        %636 = vmatpush1.msra.mxu0 0.0
        %637 = vmatprep.subr.mxu0 0.0
        %638 = vmatpush1.msra.mxu0 0.0
        %639 = vmatprep.subr.mxu0 0.0
        %640 = vmatpush1.msra.mxu0 0.0
        %641 = vmatprep.subr.mxu0 0.0
        %642 = vmatpush1.msra.mxu0 0.0
        %643 = vmatprep.subr.mxu0 0.0
        %644 = vmatpush1.msra.mxu0 0.0
        %645 = vmatprep.subr.mxu0 0.0
        %646 = vmatpush1.msra.mxu0 0.0
        %647 = vmatprep.subr.mxu0 0.0
        %648 = vmatpush1.msra.mxu0 0.0
        %649 = vmatprep.subr.mxu0 0.0
        %650 = vmatpush1.msra.mxu0 0.0
        %651 = vmatprep.subr.mxu0 0.0
        %652 = vmatpush1.msra.mxu0 0.0
        %653 = vmatprep.subr.mxu0 0.0
        %654 = vmatpush1.msra.mxu0 0.0
        %655 = vmatprep.subr.mxu0 0.0
        %656 = vmatpush1.msra.mxu0 0.0
        %657 = vmatprep.subr.mxu0 0.0
        %658 = vmatpush1.msra.mxu0 0.0
        %659 = vmatprep.subr.mxu0 0.0
        %660 = vmatpush1.msra.mxu0 0.0
        %661 = vmatprep.subr.mxu0 0.0
        %662 = vmatpush1.msra.mxu0 0.0
        %663 = vmatprep.subr.mxu0 0.0
        %664 = vmatpush1.msra.mxu0 0.0
        %665 = vmatprep.subr.mxu0 0.0
        %666 = vmatpush1.msra.mxu0 0.0
        %667 = vmatprep.subr.mxu0 0.0
        %668 = vmatpush1.msra.mxu0 0.0
        %669 = vmatprep.subr.mxu0 0.0
        %670 = vmatpush1.msra.mxu0 0.0
        %671 = vmatprep.subr.mxu0 0.0
        %672 = vmatpush1.msra.mxu0 0.0
        %673 = vmatprep.subr.mxu0 0.0
        %674 = vmatpush1.msra.mxu0 0.0
        %675 = vmatprep.subr.mxu0 0.0
        %676 = vmatpush1.msra.mxu0 0.0
        %677 = vmatprep.subr.mxu0 0.0
        %678 = vmatpush1.msra.mxu0 0.0
        %679 = vmatprep.mubr.f32.mxu0 0.0
        %680 = vmatmul.mubr.f32.gmra.mrb[0].mxu0 %v610
        %v681 = vpop.f32.mrb[0].mxu0
        %v682 = vadd.f32 %v607, %v681
        %v683 = vpop.f32.mrb[0].mxu0
        %684 = vmatprep.mubr.f32.mxu0 0.0
        %685 = vmatmul.mubr.f32.gmra.mrb[0].mxu0 %v613
        %v686 = vpop.f32.mrb[0].mxu0
        %v687 = vadd.f32 %v607, %v686
        %v688 = vpop.f32.mrb[0].mxu0
        %689 = vdwg.mxu0
        %v690 = vsel %vm561, %v512, 0.0
        %691 = vadd.xlane.f32.xlu0 %v690
        %v692 = vpop.xlane.xlu0 %691
        %v693 = vsel %vm561, %v513, 0.0
        %694 = vadd.xlane.f32.xlu0 %v693
        %v695 = vpop.xlane.xlu0 %694
        %v696 = vmul.f32 %v692, %v568
        %v697 = vmul.f32 %v695, %v568
        %v698 = vsub.f32 %v512, %v696
        %v699 = vsub.f32 %v513, %v697
        %v700 = vmul.f32 %v698, %v698
        %v701 = vmul.f32 %v699, %v699
        %v702 = vsel %vm561, %v700, 0.0
        %703 = vadd.xlane.f32.xlu0 %v702
        %v704 = vpop.xlane.xlu0 %703
        %v705 = vsel %vm561, %v701, 0.0
        %706 = vadd.xlane.f32.xlu0 %v705
        %v707 = vpop.xlane.xlu0 %706
        %v708 = vrsqrt.pop %v704
        %v709 = vmul.f32 %v704, %v708
        %vm710 = vcmp.eq.f32.partialorder %v704, inf
        %v711 = vsel %vm710, %v704, %v709
        %vm712 = vcmp.eq.f32.partialorder %v704, 0.0
        %v713 = vand.u32 %v704, 2147483648
        %v714 = vsel %vm712, %v713, %v711
        %v715 = vrsqrt.pop %v707
        %v716 = vmul.f32 %v707, %v715
        %vm717 = vcmp.eq.f32.partialorder %v707, inf
        %v718 = vsel %vm717, %v707, %v716
        %vm719 = vcmp.eq.f32.partialorder %v707, 0.0
        %v720 = vand.u32 %v707, 2147483648
        %v721 = vsel %vm719, %v720, %v718
        %v722 = vadd.f32 %v714, 1e-05
        %v723 = vadd.f32 %v721, 1e-05
        %v724 = vrcp.pop %v722
        %v725 = vmul.f32 %v698, %v724
        %v726 = vrcp.pop %v723
        %v727 = vmul.f32 %v699, %v726
        %v728 = vld [vmem:[%s6] sm:$0xff]
        %v729 = vld [vmem:[%s7] sm:$0x1]
        %v731 = vlaneseq
        %v732 = vshrl.u32 %v731, 7
        %v733 = vsub.s32 0, %v732
        %v734 = vrot.slane %v729, %v733
        %v737 = vsel %vm561, %v725, 0
        %v740 = vsel %vm561, %v727, 0
        %742 = vmatprep.subr.mxu0 0.0
        %743 = vmatpush1.msra.mxu0 %v728
        %744 = vmatprep.subr.mxu0 0.0
        %745 = vmatpush1.msra.mxu0 0.0
        %746 = vmatprep.subr.mxu0 0.0
        %747 = vmatpush1.msra.mxu0 0.0
        %748 = vmatprep.subr.mxu0 0.0
        %749 = vmatpush1.msra.mxu0 0.0
        %750 = vmatprep.subr.mxu0 0.0
        %751 = vmatpush1.msra.mxu0 0.0
        %752 = vmatprep.subr.mxu0 0.0
        %753 = vmatpush1.msra.mxu0 0.0
        %754 = vmatprep.subr.mxu0 0.0
        %755 = vmatpush1.msra.mxu0 0.0
        %756 = vmatprep.subr.mxu0 0.0
        %757 = vmatpush1.msra.mxu0 0.0
        %758 = vmatprep.subr.mxu0 0.0
        %759 = vmatpush1.msra.mxu0 0.0
        %760 = vmatprep.subr.mxu0 0.0
        %761 = vmatpush1.msra.mxu0 0.0
        %762 = vmatprep.subr.mxu0 0.0
        %763 = vmatpush1.msra.mxu0 0.0
        %764 = vmatprep.subr.mxu0 0.0
        %765 = vmatpush1.msra.mxu0 0.0
        %766 = vmatprep.subr.mxu0 0.0
        %767 = vmatpush1.msra.mxu0 0.0
        %768 = vmatprep.subr.mxu0 0.0
        %769 = vmatpush1.msra.mxu0 0.0
        %770 = vmatprep.subr.mxu0 0.0
        %771 = vmatpush1.msra.mxu0 0.0
        %772 = vmatprep.subr.mxu0 0.0
        %773 = vmatpush1.msra.mxu0 0.0
        %774 = vmatprep.subr.mxu0 0.0
        %775 = vmatpush1.msra.mxu0 0.0
        %776 = vmatprep.subr.mxu0 0.0
        %777 = vmatpush1.msra.mxu0 0.0
        %778 = vmatprep.subr.mxu0 0.0
        %779 = vmatpush1.msra.mxu0 0.0
        %780 = vmatprep.subr.mxu0 0.0
        %781 = vmatpush1.msra.mxu0 0.0
        %782 = vmatprep.subr.mxu0 0.0
        %783 = vmatpush1.msra.mxu0 0.0
        %784 = vmatprep.subr.mxu0 0.0
        %785 = vmatpush1.msra.mxu0 0.0
        %786 = vmatprep.subr.mxu0 0.0
        %787 = vmatpush1.msra.mxu0 0.0
        %788 = vmatprep.subr.mxu0 0.0
        %789 = vmatpush1.msra.mxu0 0.0
        %790 = vmatprep.subr.mxu0 0.0
        %791 = vmatpush1.msra.mxu0 0.0
        %792 = vmatprep.subr.mxu0 0.0
        %793 = vmatpush1.msra.mxu0 0.0
        %794 = vmatprep.subr.mxu0 0.0
        %795 = vmatpush1.msra.mxu0 0.0
        %796 = vmatprep.subr.mxu0 0.0
        %797 = vmatpush1.msra.mxu0 0.0
        %798 = vmatprep.subr.mxu0 0.0
        %799 = vmatpush1.msra.mxu0 0.0
        %800 = vmatprep.subr.mxu0 0.0
        %801 = vmatpush1.msra.mxu0 0.0
        %802 = vmatprep.subr.mxu0 0.0
        %803 = vmatpush1.msra.mxu0 0.0
        %804 = vmatprep.subr.mxu0 0.0
        %805 = vmatpush1.msra.mxu0 0.0
        %806 = vmatprep.mubr.f32.mxu0 0.0
        %807 = vmatmul.mubr.f32.gmra.mrb[0].mxu0 %v737
        %v808 = vpop.f32.mrb[0].mxu0
        %v809 = vadd.f32 %v734, %v808
        %v810 = vpop.f32.mrb[0].mxu0
        %811 = vmatprep.mubr.f32.mxu0 0.0
        %812 = vmatmul.mubr.f32.gmra.mrb[0].mxu0 %v740
        %v813 = vpop.f32.mrb[0].mxu0
        %v814 = vadd.f32 %v734, %v813
        %v815 = vpop.f32.mrb[0].mxu0
        %816 = vdwg.mxu0
        %v817 = vld [vmem:[%s8] sm:$0xff]
        %v818 = vld [vmem:[%s9] sm:$0x1]
        %v820 = vlaneseq
        %v821 = vshrl.u32 %v820, 7
        %v822 = vsub.s32 0, %v821
        %v823 = vrot.slane %v818, %v822
        %v826 = vsel %vm561, %v545, 0
        %v829 = vsel %vm561, %v546, 0
        %831 = vmatprep.subr.mxu0 0.0
        %832 = vmatpush1.msra.mxu0 %v817
        %833 = vmatprep.subr.mxu0 0.0
        %834 = vmatpush1.msra.mxu0 0.0
        %835 = vmatprep.subr.mxu0 0.0
        %836 = vmatpush1.msra.mxu0 0.0
        %837 = vmatprep.subr.mxu0 0.0
        %838 = vmatpush1.msra.mxu0 0.0
        %839 = vmatprep.subr.mxu0 0.0
        %840 = vmatpush1.msra.mxu0 0.0
        %841 = vmatprep.subr.mxu0 0.0
        %842 = vmatpush1.msra.mxu0 0.0
        %843 = vmatprep.subr.mxu0 0.0
        %844 = vmatpush1.msra.mxu0 0.0
        %845 = vmatprep.subr.mxu0 0.0
        %846 = vmatpush1.msra.mxu0 0.0
        %847 = vmatprep.subr.mxu0 0.0
        %848 = vmatpush1.msra.mxu0 0.0
        %849 = vmatprep.subr.mxu0 0.0
        %850 = vmatpush1.msra.mxu0 0.0
        %851 = vmatprep.subr.mxu0 0.0
        %852 = vmatpush1.msra.mxu0 0.0
        %853 = vmatprep.subr.mxu0 0.0
        %854 = vmatpush1.msra.mxu0 0.0
        %855 = vmatprep.subr.mxu0 0.0
        %856 = vmatpush1.msra.mxu0 0.0
        %857 = vmatprep.subr.mxu0 0.0
        %858 = vmatpush1.msra.mxu0 0.0
        %859 = vmatprep.subr.mxu0 0.0
        %860 = vmatpush1.msra.mxu0 0.0
        %861 = vmatprep.subr.mxu0 0.0
        %862 = vmatpush1.msra.mxu0 0.0
        %863 = vmatprep.subr.mxu0 0.0
        %864 = vmatpush1.msra.mxu0 0.0
        %865 = vmatprep.subr.mxu0 0.0
        %866 = vmatpush1.msra.mxu0 0.0
        %867 = vmatprep.subr.mxu0 0.0
        %868 = vmatpush1.msra.mxu0 0.0
        %869 = vmatprep.subr.mxu0 0.0
        %870 = vmatpush1.msra.mxu0 0.0
        %871 = vmatprep.subr.mxu0 0.0
        %872 = vmatpush1.msra.mxu0 0.0
        %873 = vmatprep.subr.mxu0 0.0
        %874 = vmatpush1.msra.mxu0 0.0
        %875 = vmatprep.subr.mxu0 0.0
        %876 = vmatpush1.msra.mxu0 0.0
        %877 = vmatprep.subr.mxu0 0.0
        %878 = vmatpush1.msra.mxu0 0.0
        %879 = vmatprep.subr.mxu0 0.0
        %880 = vmatpush1.msra.mxu0 0.0
        %881 = vmatprep.subr.mxu0 0.0
        %882 = vmatpush1.msra.mxu0 0.0
        %883 = vmatprep.subr.mxu0 0.0
        %884 = vmatpush1.msra.mxu0 0.0
        %885 = vmatprep.subr.mxu0 0.0
        %886 = vmatpush1.msra.mxu0 0.0
        %887 = vmatprep.subr.mxu0 0.0
        %888 = vmatpush1.msra.mxu0 0.0
        %889 = vmatprep.subr.mxu0 0.0
        %890 = vmatpush1.msra.mxu0 0.0
        %891 = vmatprep.subr.mxu0 0.0
        %892 = vmatpush1.msra.mxu0 0.0
        %893 = vmatprep.subr.mxu0 0.0
        %894 = vmatpush1.msra.mxu0 0.0
        %895 = vmatprep.mubr.f32.mxu0 0.0
        %896 = vmatmul.mubr.f32.gmra.mrb[0].mxu0 %v826
        %v897 = vpop.f32.mrb[0].mxu0
        %v898 = vadd.f32 %v823, %v897
        %v899 = vpop.f32.mrb[0].mxu0
        %900 = vmatprep.mubr.f32.mxu0 0.0
        %901 = vmatmul.mubr.f32.gmra.mrb[0].mxu0 %v829
        %v902 = vpop.f32.mrb[0].mxu0
        %v903 = vadd.f32 %v823, %v902
        %v904 = vpop.f32.mrb[0].mxu0
        %905 = vdwg.mxu0
        %v906 = vlaneseq
        %v907 = vshrl.u32 %v906, 7
        %v908 = vadd.s32 %v907, 8
        %v909 = vlaneseq
        %v910 = vand.u32 %v909, 127
        %s911 = sld [smem:[#allocation3 + %s39]]
        %v912 = vstv %s911
        %vm913 = vcmp.lt.s32.totalorder %v907, %v912
        %vm914 = vcmp.lt.s32.totalorder %v908, %v912
        %v915 = vsel %vm913, 1, 0
        %v916 = vsel %vm914, 1, 0
        %v917 = vcvt.s32.f32 %v915
        %v918 = vcvt.s32.f32 %v916
        %s919 = sadd.s32 %s39, 2
        %s920 = sld [smem:[#allocation3 + %s919]]
        %v921 = vstv %s920
        %vm922 = vcmp.lt.s32.totalorder %v910, %v921
        %v923 = vsel %vm922, 1, 0
        %v924 = vcvt.s32.f32 %v923
        %v925 = vsub.f32 %v924, 1.0
        %v926 = vmul.f32 %v925, 1e+30
        %v928 = vsel %vm561, %v682, 0
        %v931 = vsel %vm561, %v687, 0
        %v934 = vsel %vm561, %v809, 0
        %v937 = vsel %vm561, %v814, 0
        %939 = vmatprep.subr.mxu0 0.0
        %940 = vmatpush1.xpose.msra.mxu0 %v934
        %941 = vmatprep.subr.mxu0 0.0
        %942 = vmatpush1.xpose.msra.mxu0 %v937
        %943 = vmatprep.subr.mxu0 0.0
        %944 = vmatpush1.xpose.msra.mxu0 0.0
        %945 = vmatprep.subr.mxu0 0.0
        %946 = vmatpush1.xpose.msra.mxu0 0.0
        %947 = vmatprep.subr.mxu0 0.0
        %948 = vmatpush1.xpose.msra.mxu0 0.0
        %949 = vmatprep.subr.mxu0 0.0
        %950 = vmatpush1.xpose.msra.mxu0 0.0
        %951 = vmatprep.subr.mxu0 0.0
        %952 = vmatpush1.xpose.msra.mxu0 0.0
        %953 = vmatprep.subr.mxu0 0.0
        %954 = vmatpush1.xpose.msra.mxu0 0.0
        %955 = vmatprep.subr.mxu0 0.0
        %956 = vmatpush1.xpose.msra.mxu0 0.0
        %957 = vmatprep.subr.mxu0 0.0
        %958 = vmatpush1.xpose.msra.mxu0 0.0
        %959 = vmatprep.subr.mxu0 0.0
        %960 = vmatpush1.xpose.msra.mxu0 0.0
        %961 = vmatprep.subr.mxu0 0.0
        %962 = vmatpush1.xpose.msra.mxu0 0.0
        %963 = vmatprep.subr.mxu0 0.0
        %964 = vmatpush1.xpose.msra.mxu0 0.0
        %965 = vmatprep.subr.mxu0 0.0
        %966 = vmatpush1.xpose.msra.mxu0 0.0
        %967 = vmatprep.subr.mxu0 0.0
        %968 = vmatpush1.xpose.msra.mxu0 0.0
        %969 = vmatprep.subr.mxu0 0.0
        %970 = vmatpush1.xpose.msra.mxu0 0.0
        %971 = vmatprep.subr.mxu0 0.0
        %972 = vmatpush1.xpose.msra.mxu0 0.0
        %973 = vmatprep.subr.mxu0 0.0
        %974 = vmatpush1.xpose.msra.mxu0 0.0
        %975 = vmatprep.subr.mxu0 0.0
        %976 = vmatpush1.xpose.msra.mxu0 0.0
        %977 = vmatprep.subr.mxu0 0.0
        %978 = vmatpush1.xpose.msra.mxu0 0.0
        %979 = vmatprep.subr.mxu0 0.0
        %980 = vmatpush1.xpose.msra.mxu0 0.0
        %981 = vmatprep.subr.mxu0 0.0
        %982 = vmatpush1.xpose.msra.mxu0 0.0
        %983 = vmatprep.subr.mxu0 0.0
        %984 = vmatpush1.xpose.msra.mxu0 0.0
        %985 = vmatprep.subr.mxu0 0.0
        %986 = vmatpush1.xpose.msra.mxu0 0.0
        %987 = vmatprep.subr.mxu0 0.0
        %988 = vmatpush1.xpose.msra.mxu0 0.0
        %989 = vmatprep.subr.mxu0 0.0
        %990 = vmatpush1.xpose.msra.mxu0 0.0
        %991 = vmatprep.subr.mxu0 0.0
        %992 = vmatpush1.xpose.msra.mxu0 0.0
        %993 = vmatprep.subr.mxu0 0.0
        %994 = vmatpush1.xpose.msra.mxu0 0.0
        %995 = vmatprep.subr.mxu0 0.0
        %996 = vmatpush1.xpose.msra.mxu0 0.0
        %997 = vmatprep.subr.mxu0 0.0
        %998 = vmatpush1.xpose.msra.mxu0 0.0
        %999 = vmatprep.subr.mxu0 0.0
        %1000 = vmatpush1.xpose.msra.mxu0 0.0
        %1001 = vmatprep.subr.mxu0 0.0
        %1002 = vmatpush1.xpose.msra.mxu0 0.0
        %1003 = vmatprep.mubr.f32.mxu0 0.0
        %1004 = vmatmul.mubr.f32.gmra.mrb[0].mxu0 %v928
        %v1005 = vpop.f32.mrb[0].mxu0
        %v1006 = vadd.f32 %v926, %v1005
        %v1007 = vpop.f32.mrb[0].mxu0
        %1008 = vmatprep.mubr.f32.mxu0 0.0
        %1009 = vmatmul.mubr.f32.gmra.mrb[0].mxu0 %v931
        %v1010 = vpop.f32.mrb[0].mxu0
        %v1011 = vadd.f32 %v926, %v1010
        %v1012 = vpop.f32.mrb[0].mxu0
        %1013 = vdwg.mxu0
        %vm1014 = vcmask 130048
        %v1015 = vsel %vm1014, %v1006, -inf
        %1016 = vmax.xlane.f32.xlu0 %v1015
        %v1017 = vpop.xlane.xlu0 %1016
        %v1018 = vsel %vm1014, %v1011, -inf
        %1019 = vmax.xlane.f32.xlu0 %v1018
        %v1020 = vpop.xlane.xlu0 %1019
        %v1021 = vsub.f32 %v1006, %v1017
        %v1022 = vsub.f32 %v1011, %v1020
        %v1023 = vmul.f32 %v1021, 1.442695
        %v1024 = vpow.pop %v1023
        %v1025 = vmul.f32 %v1022, 1.442695
        %v1026 = vpow.pop %v1025
        %v1027 = vmul.f32 %v1024, %v924
        %v1028 = vmul.f32 %v1026, %v924
        %v1029 = vsel %vm1014, %v1027, 0.0
        %1030 = vadd.xlane.f32.xlu0 %v1029
        %v1031 = vpop.xlane.xlu0 %1030
        %v1032 = vsel %vm1014, %v1028, 0.0
        %1033 = vadd.xlane.f32.xlu0 %v1032
        %v1034 = vpop.xlane.xlu0 %1033
        %v1035 = vrcp.pop %v1031
        %v1036 = vrcp.pop %v1034
        %v1037 = vmul.f32 %v1027, %v1035
        %v1038 = vmul.f32 %v1028, %v1036
        %v1039 = vmul.f32 %v1037, %v917
        %v1040 = vmul.f32 %v1038, %v918
        %v1042 = vsel %vm1014, %v1039, 0
        %v1045 = vsel %vm1014, %v1040, 0
        %1047 = vmatprep.subr.mxu0 0.0
        %1048 = vmatpush1.msra.mxu0 %v898
        %1049 = vmatprep.subr.mxu0 0.0
        %1050 = vmatpush1.msra.mxu0 %v903
        %1051 = vmatprep.subr.mxu0 0.0
        %1052 = vmatpush1.msra.mxu0 0.0
        %1053 = vmatprep.subr.mxu0 0.0
        %1054 = vmatpush1.msra.mxu0 0.0
        %1055 = vmatprep.subr.mxu0 0.0
        %1056 = vmatpush1.msra.mxu0 0.0
        %1057 = vmatprep.subr.mxu0 0.0
        %1058 = vmatpush1.msra.mxu0 0.0
        %1059 = vmatprep.subr.mxu0 0.0
        %1060 = vmatpush1.msra.mxu0 0.0
        %1061 = vmatprep.subr.mxu0 0.0
        %1062 = vmatpush1.msra.mxu0 0.0
        %1063 = vmatprep.subr.mxu0 0.0
        %1064 = vmatpush1.msra.mxu0 0.0
        %1065 = vmatprep.subr.mxu0 0.0
        %1066 = vmatpush1.msra.mxu0 0.0
        %1067 = vmatprep.subr.mxu0 0.0
        %1068 = vmatpush1.msra.mxu0 0.0
        %1069 = vmatprep.subr.mxu0 0.0
        %1070 = vmatpush1.msra.mxu0 0.0
        %1071 = vmatprep.subr.mxu0 0.0
        %1072 = vmatpush1.msra.mxu0 0.0
        %1073 = vmatprep.subr.mxu0 0.0
        %1074 = vmatpush1.msra.mxu0 0.0
        %1075 = vmatprep.subr.mxu0 0.0
        %1076 = vmatpush1.msra.mxu0 0.0
        %1077 = vmatprep.subr.mxu0 0.0
        %1078 = vmatpush1.msra.mxu0 0.0
        %1079 = vmatprep.subr.mxu0 0.0
        %1080 = vmatpush1.msra.mxu0 0.0
        %1081 = vmatprep.subr.mxu0 0.0
        %1082 = vmatpush1.msra.mxu0 0.0
        %1083 = vmatprep.subr.mxu0 0.0
        %1084 = vmatpush1.msra.mxu0 0.0
        %1085 = vmatprep.subr.mxu0 0.0
        %1086 = vmatpush1.msra.mxu0 0.0
        %1087 = vmatprep.subr.mxu0 0.0
        %1088 = vmatpush1.msra.mxu0 0.0
        %1089 = vmatprep.subr.mxu0 0.0
        %1090 = vmatpush1.msra.mxu0 0.0
        %1091 = vmatprep.subr.mxu0 0.0
        %1092 = vmatpush1.msra.mxu0 0.0
        %1093 = vmatprep.subr.mxu0 0.0
        %1094 = vmatpush1.msra.mxu0 0.0
        %1095 = vmatprep.subr.mxu0 0.0
        %1096 = vmatpush1.msra.mxu0 0.0
        %1097 = vmatprep.subr.mxu0 0.0
        %1098 = vmatpush1.msra.mxu0 0.0
        %1099 = vmatprep.subr.mxu0 0.0
        %1100 = vmatpush1.msra.mxu0 0.0
        %1101 = vmatprep.subr.mxu0 0.0
        %1102 = vmatpush1.msra.mxu0 0.0
        %1103 = vmatprep.subr.mxu0 0.0
        %1104 = vmatpush1.msra.mxu0 0.0
        %1105 = vmatprep.subr.mxu0 0.0
        %1106 = vmatpush1.msra.mxu0 0.0
        %1107 = vmatprep.subr.mxu0 0.0
        %1108 = vmatpush1.msra.mxu0 0.0
        %1109 = vmatprep.subr.mxu0 0.0
        %1110 = vmatpush1.msra.mxu0 0.0
        %1111 = vmatprep.mubr.f32.mxu0 0.0
        %1112 = vmatmul.mubr.f32.gmra.mrb[0].mxu0 %v1042
        %v1113 = vpop.f32.mrb[0].mxu0
        %v1114 = vadd.f32 0.0, %v1113
        %v1115 = vpop.f32.mrb[0].mxu0
        %1116 = vmatprep.mubr.f32.mxu0 0.0
        %1117 = vmatmul.mubr.f32.gmra.mrb[0].mxu0 %v1045
        %v1118 = vpop.f32.mrb[0].mxu0
        %v1119 = vadd.f32 0.0, %v1118
        %v1120 = vpop.f32.mrb[0].mxu0
        %1121 = vdwg.mxu0
        %1122 = vst.msk [vmem:[%s454] sm:$0xff] %vm1014, %v1039
        %1123 = vst.msk [vmem:[%s454 + $0x8] sm:$0xff] %vm1014, %v1040
        %1124 = vxpose.xlu0.b32.start [1/16] %v1114, 128
        %1125 = vxpose.xlu0.b32.cont [2/16] %v1119, 128
        %1126 = vxpose.xlu0.b32.cont [3/16] 0.0, 128
        %1127 = vxpose.xlu0.b32.cont [4/16] 0.0, 128
        %1128 = vxpose.xlu0.b32.cont [5/16] 0.0, 128
        %1129 = vxpose.xlu0.b32.cont [6/16] 0.0, 128
        %1130 = vxpose.xlu0.b32.cont [7/16] 0.0, 128
        %1131 = vxpose.xlu0.b32.cont [8/16] 0.0, 128
        %1132 = vxpose.xlu0.b32.cont [9/16] 0.0, 128
        %1133 = vxpose.xlu0.b32.cont [10/16] 0.0, 128
        %1134 = vxpose.xlu0.b32.cont [11/16] 0.0, 128
        %1135 = vxpose.xlu0.b32.cont [12/16] 0.0, 128
        %1136 = vxpose.xlu0.b32.cont [13/16] 0.0, 128
        %1137 = vxpose.xlu0.b32.cont [14/16] 0.0, 128
        %1138 = vxpose.xlu0.b32.cont [15/16] 0.0, 128
        %1139 = vxpose.xlu0.b32.end [16/16] 0.0, 128
        %v1140 = vpop.trf.xlu0
        %v1141 = vpop.trf.xlu0
        %v1142 = vpop.trf.xlu0
        %v1143 = vpop.trf.xlu0
        %v1144 = vpop.trf.xlu0
        %v1145 = vpop.trf.xlu0
        %v1146 = vpop.trf.xlu0
        %v1147 = vpop.trf.xlu0
        %v1148 = vpop.trf.xlu0
        %v1149 = vpop.trf.xlu0
        %v1150 = vpop.trf.xlu0
        %v1151 = vpop.trf.xlu0
        %v1152 = vpop.trf.xlu0
        %v1153 = vpop.trf.xlu0
        %v1154 = vpop.trf.xlu0
        %v1155 = vpop.trf.xlu0
        %1156 = vst.msk [vmem:[%s461] sm:$0xff] %vm1014, %v1140
        %s1157 = sand.u32 %s251, 1
        %s1158 = scalar_lea.sflag [#allocation6], %s1157
        %s1159 = sand.u32 %s251, 1
        %s1160 = smul.addr %s1159, 16
        %s1161 = scalar_lea.vmem [#allocation10], %s1160
        %s1162 = sand.u32 %s277, 1
        %s1163 = scalar_lea.sflag [#allocation12], %s1162
        %s1164 = sand.u32 %s277, 1
        %s1165 = smul.addr %s1164, 8
        %s1166 = scalar_lea.vmem [#allocation11], %s1165
        // Predicated region
        $region69: #{tpu_custom_call.1} parent=55 // pred_check
          %p1167 = pneg %p261
        $region70: #{tpu_custom_call.1} parent=55 // pred_check_branch
          %1169 = sbr.rel (%p1167) target = $region72
        $region71: #{tpu_custom_call.1} parent=55 // pred_region
          %s1171 = ssub.s32 256, 256
          %1172 = vsyncadd %s1158, %s1171
          %s1173 = smul.addr %s39, 2
          %s1174 = smul.addr %s1173, 128
          %s1175 = scalar_lea.hbm %s10, %s1174
          %s1176 = sshll.u32 %s1161, 4
          %s1177 = int_to_ptr.vmem [resolvable:$true] %s1176
          %1182 = dma.vmem_to_hbm [thread:$0]  %s1177, 256, %s1175, %s1158, 128, 128, 8
        $region72: #{tpu_custom_call.1} parent=55 // pred_fallthru
          _
        // Predicated region
        $region73: #{tpu_custom_call.1} parent=55 // pred_check
          %p1183 = pneg %p287
        $region74: #{tpu_custom_call.1} parent=55 // pred_check_branch
          %1185 = sbr.rel (%p1183) target = $region76
        $region75: #{tpu_custom_call.1} parent=55 // pred_region
          %s1187 = ssub.s32 128, 128
          %1188 = vsyncadd %s1163, %s1187
          %s1189 = smul.addr %s39, 128
          %s1190 = scalar_lea.hbm %s11, %s1189
          %s1192 = sshll.u32 %s1166, 4
          %s1193 = int_to_ptr.vmem [resolvable:$true] %s1192
          %1195 = dma.vmem_to_hbm [thread:$0]  %s1193, 128, %s1190, %s1163
        $region76: #{tpu_custom_call.1} parent=55 // pred_fallthru
          _
      $region56: #{tpu_custom_call.1} parent=5 // pred_fallthru
        _
      %p1196 = scmp.le.s32.totalorder 2, %s34
      // Predicated region
      $region77: #{tpu_custom_call.1} parent=5 // pred_check
        %p1197 = pneg %p1196
      $region78: #{tpu_custom_call.1} parent=5 // pred_check_branch
        %1199 = sbr.rel (%p1197) target = $region80
      $region79: #{tpu_custom_call.1} parent=5 // pred_region
        %s1200 = ssub.s32 %s34, 2
        // Predicated region
        $region81: #{tpu_custom_call.1} parent=79 // pred_check
          %p1201 = pneg %p267
        $region82: #{tpu_custom_call.1} parent=79 // pred_check_branch
          %1203 = sbr.rel (%p1201) target = $region84
        $region83: #{tpu_custom_call.1} parent=79 // pred_region
          %s1204 = sand.u32 %s252, 1
          %s1205 = scalar_lea.sflag [#allocation6], %s1204
          %s1206 = sand.u32 %s252, 1
          %s1207 = smul.addr %s1206, 16
          %s1208 = scalar_lea.vmem [#allocation10], %s1207
          %1209 = dma.done %s1205, 256
        $region84: #{tpu_custom_call.1} parent=79 // pred_fallthru
          _
        // Predicated region
        $region85: #{tpu_custom_call.1} parent=79 // pred_check
          %p1210 = pneg %p293
        $region86: #{tpu_custom_call.1} parent=79 // pred_check_branch
          %1212 = sbr.rel (%p1210) target = $region88
        $region87: #{tpu_custom_call.1} parent=79 // pred_region
          %s1213 = sand.u32 %s278, 1
          %s1214 = scalar_lea.sflag [#allocation12], %s1213
          %s1215 = sand.u32 %s278, 1
          %s1216 = smul.addr %s1215, 8
          %s1217 = scalar_lea.vmem [#allocation11], %s1216
          %1218 = dma.done %s1214, 128
        $region88: #{tpu_custom_call.1} parent=79 // pred_fallthru
          _
      $region80: #{tpu_custom_call.1} parent=5 // pred_fallthru
        _
    $region6: #{tpu_custom_call.1} parent=1 // loop_footer
      %s38 = sadd.s32 1, %s34
    $region7: #{tpu_custom_call.1} parent=1 // loop_footer_branch
      %33 = sbr.rel target = $region3
    $region8: #{tpu_custom_call.1} parent=1 // loop_exit
      _
    %1219 = vsyncpa [#allocation5], 1
    %s1220 = scalar_lea.sflag [#allocation5], 1
    %1221 = vsyncpa %s1220, 1
    %1222 = vsyncpa [#allocation8], 1
    %s1223 = scalar_lea.sflag [#allocation8], 1
    %1224 = vsyncpa %s1223, 1
    %1225 = vsyncpa [#allocation6], 1
    %s1226 = scalar_lea.sflag [#allocation6], 1
    %1227 = vsyncpa %s1226, 1
    %1228 = vsyncpa [#allocation12], 1
    %s1229 = scalar_lea.sflag [#allocation12], 1
    %1230 = vsyncpa %s1229, 1

</llo_original>
